<compile_context>
chip_gen: v7x
topology: tpu7x:2x2x1
jax: 0.10.0
libtpu: 0.0.40
codegen_flags: <defaults>
</compile_context>

<pallas_src>
import jax
import jax.numpy as jnp
from jax import lax
from jax.experimental import pallas as pl
from jax.experimental.pallas import tpu as pltpu

# ----- model hyper-parameters (small, consistent with the module) -----------
GRAPH_EMBEDDING_SIZE = 8      # hidden size H
FRAME_NUM = 10                # time steps
LINKS = 4                     # small stand-in for train_K = 20
BATCHES = 2                   # small stand-in for batches = 50
N_NODES = LINKS * BATCHES     # nodes in the graph
N_EDGES = 16                  # edges per time step

# TODO(synk): `agg_mean` / `agg_var` are undefined module-level globals in the
# original source; use deterministic identity normalization (0.0, 1.0).
AGG_MEAN = 0.0
AGG_VAR = 1.0


# ----------------------------- Pallas kernel --------------------------------
def _fused_kernel(x_ref, ea_ref, src_ref, tgt_ref,
                  w1x_ref, w1h_ref, b1_ref, w2_ref, b2_ref, w3_ref, b3_ref,
                  w4x_ref, w4h_ref, w4n_ref, b4_ref, w5_ref, b5_ref,
                  w6_ref, b6_ref, w7_ref, b7_ref,
                  out_ref, hid_ref):
    f32 = jnp.float32

    # Hidden state persists in VMEM scratch across the (sequential) time grid.
    @pl.when(pl.program_id(0) == 0)
    def _():
        hid_ref[...] = jnp.zeros_like(hid_ref)

    hid = hid_ref[...]                      # (H, N)
    x0 = x_ref[0:1, :]                      # (1, N)  node feature 0
    x1 = x_ref[1:2, :]                      # (1, N)  node feature 1
    ea = ea_ref[...]                        # (1, E)
    src = src_ref[...]                      # (1, E) int32
    tgt = tgt_ref[...]                      # (E, 1) int32

    n = hid.shape[1]
    e = ea.shape[1]

    # 0/1 gather / scatter-add matrices built in-kernel (VPU compares, no HBM).
    gather = (lax.broadcasted_iota(jnp.int32, (n, e), 0) == src).astype(f32)   # (N, E)
    scatter = (lax.broadcasted_iota(jnp.int32, (e, n), 1) == tgt).astype(f32)  # (E, N)

    # --- message: per edge, inputs are [x_src[:, 0], hidden_src] -------------
    hid_j = jnp.dot(hid, gather, preferred_element_type=f32)     # (H, E)
    x0_j = jnp.dot(x0, gather, preferred_element_type=f32)       # (1, E)

    h1 = jnp.maximum(jnp.dot(w1h_ref[...], hid_j, preferred_element_type=f32)
                     + w1x_ref[...] * x0_j + b1_ref[...], 0.0)            # (32, E)
    h2 = jnp.maximum(jnp.dot(w2_ref[...], h1, preferred_element_type=f32)
                     + b2_ref[...], 0.0)                                  # (32, E)
    msg = jax.nn.sigmoid(jnp.dot(w3_ref[...], h2, preferred_element_type=f32)
                         + b3_ref[...])                                   # (1, E)
    agg = msg * ea                                                        # (1, E)

    # --- aggregate (scatter-add over target nodes) ---------------------------
    air_agg = jnp.dot(agg, scatter, preferred_element_type=f32)           # (1, N)
    norm = (air_agg - AGG_MEAN) / AGG_VAR

    # --- update: [x[:, 1], hidden, norm] -> mlp2 -> tanh ----------------------
    g1 = jnp.maximum(jnp.dot(w4h_ref[...], hid, preferred_element_type=f32)
                     + w4x_ref[...] * x1 + w4n_ref[...] * norm
                     + b4_ref[...], 0.0)                                  # (32, N)
    g2 = jnp.maximum(jnp.dot(w5_ref[...], g1, preferred_element_type=f32)
                     + b5_ref[...], 0.0)                                  # (H, N)
    new_hid = jnp.tanh(g2)
    hid_ref[...] = new_hid

    # --- readout h2o ----------------------------------------------------------
    o1 = jnp.maximum(jnp.dot(w6_ref[...], new_hid, preferred_element_type=f32)
                     + b6_ref[...], 0.0)                                  # (16, N)
    out_ref[...] = jax.nn.sigmoid(
        jnp.dot(w7_ref[...], o1, preferred_element_type=f32) + b7_ref[...])  # (1, N)


# ----------------------------- parameters -----------------------------------
def init_params(key):
    H = GRAPH_EMBEDDING_SIZE

    def lin(key, fan_in, fan_out):
        kw, kb = jax.random.split(key)
        w = jax.random.normal(kw, (fan_in, fan_out), jnp.float32) * 0.1
        b = jax.random.normal(kb, (1, fan_out), jnp.float32) * 0.1
        return w, b

    ks = jax.random.split(key, 7)
    # mlp1: MLP([1+H, 32, 32]) + Lin(32,1)+Sigmoid
    w1, b1 = lin(ks[0], 1 + H, 32)
    w2, b2 = lin(ks[1], 32, 32)
    w3, b3 = lin(ks[2], 32, 1)
    # mlp2: MLP([1 + 1 + H, 32, H])
    w4, b4 = lin(ks[3], 2 + H, 32)
    w5, b5 = lin(ks[4], 32, H)
    # h2o: MLP([H, 16]) + Lin(16,1)+Sigmoid
    w6, b6 = lin(ks[5], H, 16)
    w7, b7 = lin(ks[6], 16, 1)
    return dict(w1=w1, b1=b1, w2=w2, b2=b2, w3=w3, b3=b3,
                w4=w4, b4=b4, w5=w5, b5=b5,
                w6=w6, b6=b6, w7=w7, b7=b7)


# ------------------------------ forward pass ---------------------------------
@jax.jit
def air_mprnn_forward(params, x, edge_attr, edge_index):
    """Fused Pallas forward. Returns outputs of shape (frame_num, N, 1)."""
    H = GRAPH_EMBEDDING_SIZE
    N, frame_num, _ = x.shape
    E = edge_attr.shape[0]

    p = params
    # feature-major (out, in) weights + column biases (out, 1)
    w1 = p["w1"]                                        # (1+H, 32)
    w1x, w1h = w1[0:1, :].T, w1[1:, :].T                # (32,1), (32,H)
    w4 = p["w4"]                                        # (2+H, 32)
    w4x, w4h, w4n = w4[0:1, :].T, w4[1:1 + H, :].T, w4[1 + H:, :].T
    w2t, w3t = p["w2"].T, p["w3"].T                     # (32,32), (1,32)
    w5t, w6t, w7t = p["w5"].T, p["w6"].T, p["w7"].T     # (H,32), (16,H), (1,16)
    b1, b2, b3 = p["b1"].T, p["b2"].T, p["b3"].T
    b4, b5, b6, b7 = p["b4"].T, p["b5"].T, p["b6"].T, p["b7"].T

    # time-leading, feature-major data layout (lane axis = nodes / edges)
    x_fm = jnp.transpose(x, (1, 2, 0))                       # (T, 2, N)
    ea_fm = jnp.transpose(edge_attr, (1, 2, 0))              # (T, 1, E)
    src_row = edge_index[0].astype(jnp.int32)[:, None, :]    # (T, 1, E)
    tgt_col = edge_index[1].astype(jnp.int32)[:, :, None]    # (T, E, 1)

    weights = (w1x, w1h, b1, w2t, b2, w3t, b3,
               w4x, w4h, w4n, b4, w5t, b5, w6t, b6, w7t, b7)

    def time_spec(d0, d1):
        # one time step per grid index; time dim squeezed in the kernel
        return pl.BlockSpec((None, d0, d1), lambda t: (t, 0, 0))

    def const_spec(arr):
        # constant index_map -> block stays resident in VMEM across the grid
        return pl.BlockSpec(arr.shape, lambda t: (0, 0))

    out = pl.pallas_call(
        _fused_kernel,
        grid=(frame_num,),
        out_shape=jax.ShapeDtypeStruct((frame_num, 1, N), jnp.float32),
        in_specs=[time_spec(2, N), time_spec(1, E),
                  time_spec(1, E), time_spec(E, 1)]
                 + [const_spec(w) for w in weights],
        out_specs=pl.BlockSpec((None, 1, N), lambda t: (t, 0, 0)),
        scratch_shapes=[pltpu.VMEM((H, N), jnp.float32)],
        compiler_params=pltpu.CompilerParams(
            dimension_semantics=("arbitrary",)),       # recurrence over time
    )(x_fm, ea_fm, src_row, tgt_col, *weights)

    return jnp.transpose(out, (0, 2, 1))                     # (T, N, 1)


# --------------------------- pure-JAX reference ------------------------------
def air_mprnn_reference(params, x, edge_attr, edge_index):
    H = GRAPH_EMBEDDING_SIZE
    N = x.shape[0]
    frame_num = x.shape[1]
    p = params
    hidden = jnp.zeros((N, H), jnp.float32)
    outs = []
    for t in range(frame_num):
        x_t = x[:, t, :]
        ea_t = edge_attr[:, t, :]
        src = edge_index[0, t, :]
        tgt = edge_index[1, t, :]
        xh = jnp.concatenate([x_t[:, :2], hidden], axis=1)       # (N, 2+H)
        x_j = xh[src]                                            # (E, 2+H)
        tmp = jnp.concatenate([x_j[:, :1], x_j[:, 2:]], axis=1)  # (E, 1+H)
        h = jnp.maximum(tmp @ p["w1"] + p["b1"], 0.0)
        h = jnp.maximum(h @ p["w2"] + p["b2"], 0.0)
        msg = jax.nn.sigmoid(h @ p["w3"] + p["b3"]) * ea_t       # (E, 1)
        air_agg = jnp.zeros((N, 1), jnp.float32).at[tgt].add(msg)
        norm = (air_agg - AGG_MEAN) / AGG_VAR
        tmp2 = jnp.concatenate([xh[:, 1:], norm], axis=1)        # (N, 2+H)
        g = jnp.maximum(tmp2 @ p["w4"] + p["b4"], 0.0)
        g = jnp.maximum(g @ p["w5"] + p["b5"], 0.0)
        hidden = jnp.tanh(g)
        o = jnp.maximum(hidden @ p["w6"] + p["b6"], 0.0)
        out_t = jax.nn.sigmoid(o @ p["w7"] + p["b7"])
        outs.append(out_t)
    return jnp.stack(outs, axis=0)


# ---------------------------------- main -------------------------------------
if __name__ == "__main__":
    key = jax.random.PRNGKey(0)
    k_par, k_x, k_ea, k_src, k_tgt = jax.random.split(key, 5)

    params = init_params(k_par)

    x = jax.random.normal(k_x, (N_NODES, FRAME_NUM, 2), jnp.float32)
    edge_attr = jax.random.uniform(k_ea, (N_EDGES, FRAME_NUM, 1), jnp.float32)
    src = jax.random.randint(k_src, (FRAME_NUM, N_EDGES), 0, N_NODES).astype(jnp.int32)
    tgt = jax.random.randint(k_tgt, (FRAME_NUM, N_EDGES), 0, N_NODES).astype(jnp.int32)
    edge_index = jnp.stack([src, tgt], axis=0)          # (2, frame_num, E)

    outputs = air_mprnn_forward(params, x, edge_attr, edge_index)
    outputs = jax.block_until_ready(outputs)

    ref = air_mprnn_reference(params, x, edge_attr, edge_index)
    ref = jax.block_until_ready(ref)

    assert outputs.shape == (FRAME_NUM, N_NODES, 1), outputs.shape
    max_diff = float(jnp.max(jnp.abs(outputs - ref)))
    assert max_diff < 1e-3, f"mismatch vs reference: {max_diff}"

    print("KERNEL_OK")
</pallas_src>

<mosaic_0001>
module attributes {stable_mosaic.version = 11 : i64} {
  func.func @_fused_kernel(%arg0: i32, %arg1: memref<1x2x8xf32, #tpu.memory_space<vmem>>, %arg2: memref<1x1x16xf32, #tpu.memory_space<vmem>>, %arg3: memref<1x1x16xi32, #tpu.memory_space<vmem>>, %arg4: memref<1x16x1xi32, #tpu.memory_space<vmem>>, %arg5: memref<32x1xf32, #tpu.memory_space<vmem>>, %arg6: memref<32x8xf32, #tpu.memory_space<vmem>>, %arg7: memref<32x1xf32, #tpu.memory_space<vmem>>, %arg8: memref<32x32xf32, #tpu.memory_space<vmem>>, %arg9: memref<32x1xf32, #tpu.memory_space<vmem>>, %arg10: memref<1x32xf32, #tpu.memory_space<vmem>>, %arg11: memref<1x1xf32, #tpu.memory_space<vmem>>, %arg12: memref<32x1xf32, #tpu.memory_space<vmem>>, %arg13: memref<32x8xf32, #tpu.memory_space<vmem>>, %arg14: memref<32x1xf32, #tpu.memory_space<vmem>>, %arg15: memref<32x1xf32, #tpu.memory_space<vmem>>, %arg16: memref<8x32xf32, #tpu.memory_space<vmem>>, %arg17: memref<8x1xf32, #tpu.memory_space<vmem>>, %arg18: memref<16x8xf32, #tpu.memory_space<vmem>>, %arg19: memref<16x1xf32, #tpu.memory_space<vmem>>, %arg20: memref<1x16xf32, #tpu.memory_space<vmem>>, %arg21: memref<1x1xf32, #tpu.memory_space<vmem>>, %arg22: memref<1x1x8xf32, #tpu.memory_space<vmem>>, %arg23: memref<8x8xf32, #tpu.memory_space<vmem>>) attributes {dimension_semantics = [#tpu.dimension_semantics<arbitrary>], iteration_bounds = array<i64: 10>, scalar_prefetch = 0 : i64, scratch_operands = 1 : i64, tpu.core_type = #tpu.core_type<tc>, window_params = [{transform_indices = @transform_0, window_bounds = array<i64: 1, 2, 8>}, {transform_indices = @transform_1, window_bounds = array<i64: 1, 1, 16>}, {transform_indices = @transform_2, window_bounds = array<i64: 1, 1, 16>}, {transform_indices = @transform_3, window_bounds = array<i64: 1, 16, 1>}, {pipeline_mode = #tpu.pipeline_mode<synchronous>, transform_indices = @transform_4, window_bounds = array<i64: 32, 1>}, {pipeline_mode = #tpu.pipeline_mode<synchronous>, transform_indices = @transform_5, window_bounds = array<i64: 32, 8>}, {pipeline_mode = #tpu.pipeline_mode<synchronous>, transform_indices = @transform_6, window_bounds = array<i64: 32, 1>}, {pipeline_mode = #tpu.pipeline_mode<synchronous>, transform_indices = @transform_7, window_bounds = array<i64: 32, 32>}, {pipeline_mode = #tpu.pipeline_mode<synchronous>, transform_indices = @transform_8, window_bounds = array<i64: 32, 1>}, {pipeline_mode = #tpu.pipeline_mode<synchronous>, transform_indices = @transform_9, window_bounds = array<i64: 1, 32>}, {pipeline_mode = #tpu.pipeline_mode<synchronous>, transform_indices = @transform_10, window_bounds = array<i64: 1, 1>}, {pipeline_mode = #tpu.pipeline_mode<synchronous>, transform_indices = @transform_11, window_bounds = array<i64: 32, 1>}, {pipeline_mode = #tpu.pipeline_mode<synchronous>, transform_indices = @transform_12, window_bounds = array<i64: 32, 8>}, {pipeline_mode = #tpu.pipeline_mode<synchronous>, transform_indices = @transform_13, window_bounds = array<i64: 32, 1>}, {pipeline_mode = #tpu.pipeline_mode<synchronous>, transform_indices = @transform_14, window_bounds = array<i64: 32, 1>}, {pipeline_mode = #tpu.pipeline_mode<synchronous>, transform_indices = @transform_15, window_bounds = array<i64: 8, 32>}, {pipeline_mode = #tpu.pipeline_mode<synchronous>, transform_indices = @transform_16, window_bounds = array<i64: 8, 1>}, {pipeline_mode = #tpu.pipeline_mode<synchronous>, transform_indices = @transform_17, window_bounds = array<i64: 16, 8>}, {pipeline_mode = #tpu.pipeline_mode<synchronous>, transform_indices = @transform_18, window_bounds = array<i64: 16, 1>}, {pipeline_mode = #tpu.pipeline_mode<synchronous>, transform_indices = @transform_19, window_bounds = array<i64: 1, 16>}, {pipeline_mode = #tpu.pipeline_mode<synchronous>, transform_indices = @transform_20, window_bounds = array<i64: 1, 1>}, {transform_indices = @transform_21, window_bounds = array<i64: 1, 1, 8>}]} {
    %c0_i32 = arith.constant 0 : i32
    %0 = arith.cmpi eq, %arg0, %c0_i32 : i32
    %1 = arith.extui %0 : i1 to i32
    %c0_i32_0 = arith.constant 0 : i32
    %2 = arith.cmpi ne, %1, %c0_i32_0 : i32
    scf.if %2 {
      %cst_73 = arith.constant 0.000000e+00 : f32
      %107 = vector.broadcast %cst_73 : f32 to vector<8x8xf32>
      %c0_74 = arith.constant 0 : index
      %c0_75 = arith.constant 0 : index
      %108 = vector.load %arg23[%c0_74, %c0_75] : memref<8x8xf32, #tpu.memory_space<vmem>>, vector<8x8xf32>
      tpu.vector_store %arg23[%c0_74, %c0_75], %107 {strides = array<i32>} : memref<8x8xf32, #tpu.memory_space<vmem>>, vector<8x8xf32>,
    } else {
    }
    %c0 = arith.constant 0 : index
    %c0_1 = arith.constant 0 : index
    %3 = vector.load %arg23[%c0, %c0_1] : memref<8x8xf32, #tpu.memory_space<vmem>>, vector<8x8xf32>
    %c0_2 = arith.constant 0 : index
    %c0_3 = arith.constant 0 : index
    %c0_4 = arith.constant 0 : index
    %4 = vector.load %arg1[%c0_2, %c0_3, %c0_4] : memref<1x2x8xf32, #tpu.memory_space<vmem>>, vector<1x1x8xf32>
    %5 = vector.shape_cast %4 : vector<1x1x8xf32> to vector<1x8xf32>
    %c0_5 = arith.constant 0 : index
    %c1 = arith.constant 1 : index
    %c0_6 = arith.constant 0 : index
    %6 = vector.load %arg1[%c0_5, %c1, %c0_6] : memref<1x2x8xf32, #tpu.memory_space<vmem>>, vector<1x1x8xf32>
    %7 = vector.shape_cast %6 : vector<1x1x8xf32> to vector<1x8xf32>
    %c0_7 = arith.constant 0 : index
    %c0_8 = arith.constant 0 : index
    %c0_9 = arith.constant 0 : index
    %8 = vector.load %arg2[%c0_7, %c0_8, %c0_9] : memref<1x1x16xf32, #tpu.memory_space<vmem>>, vector<1x1x16xf32>
    %9 = vector.shape_cast %8 : vector<1x1x16xf32> to vector<1x16xf32>
    %c0_10 = arith.constant 0 : index
    %c0_11 = arith.constant 0 : index
    %c0_12 = arith.constant 0 : index
    %10 = vector.load %arg3[%c0_10, %c0_11, %c0_12] : memref<1x1x16xi32, #tpu.memory_space<vmem>>, vector<1x1x16xi32>
    %11 = vector.shape_cast %10 : vector<1x1x16xi32> to vector<1x16xi32>
    %c0_13 = arith.constant 0 : index
    %c0_14 = arith.constant 0 : index
    %c0_15 = arith.constant 0 : index
    %12 = vector.load %arg4[%c0_13, %c0_14, %c0_15] : memref<1x16x1xi32, #tpu.memory_space<vmem>>, vector<1x16x1xi32>
    %13 = vector.shape_cast %12 : vector<1x16x1xi32> to vector<16x1xi32>
    %14 = tpu.iota {dimensions = array<i32: 0>} : vector<8x16xi32>
    %15 = vector.broadcast %11 : vector<1x16xi32> to vector<8x16xi32>
    %16 = arith.cmpi eq, %14, %15 : vector<8x16xi32>
    %17 = arith.extui %16 : vector<8x16xi1> to vector<8x16xi32>
    %18 = arith.sitofp %17 : vector<8x16xi32> to vector<8x16xf32>
    %19 = tpu.iota {dimensions = array<i32: 1>} : vector<16x8xi32>
    %20 = vector.broadcast %13 : vector<16x1xi32> to vector<16x8xi32>
    %21 = arith.cmpi eq, %19, %20 : vector<16x8xi32>
    %22 = arith.extui %21 : vector<16x8xi1> to vector<16x8xi32>
    %23 = arith.sitofp %22 : vector<16x8xi32> to vector<16x8xf32>
    %cst = arith.constant dense<0.000000e+00> : vector<8x16xf32>
    %24 = tpu.matmul %3, %18, %cst {dimension_numbers = #tpu.dot_dimension_numbers<[1], [0], [0], [1], [0, 0, 1, 1], [], []>} : vector<8x8xf32>, vector<8x16xf32>, vector<8x16xf32> -> vector<8x16xf32>
    %cst_16 = arith.constant dense<0.000000e+00> : vector<1x16xf32>
    %25 = tpu.matmul %5, %18, %cst_16 {dimension_numbers = #tpu.dot_dimension_numbers<[1], [0], [0], [1], [0, 0, 1, 1], [], []>} : vector<1x8xf32>, vector<8x16xf32>, vector<1x16xf32> -> vector<1x16xf32>
    %c0_17 = arith.constant 0 : index
    %c0_18 = arith.constant 0 : index
    %26 = vector.load %arg6[%c0_17, %c0_18] : memref<32x8xf32, #tpu.memory_space<vmem>>, vector<32x8xf32>
    %cst_19 = arith.constant dense<0.000000e+00> : vector<32x16xf32>
    %27 = tpu.matmul %26, %24, %cst_19 {dimension_numbers = #tpu.dot_dimension_numbers<[1], [0], [0], [1], [0, 0, 1, 1], [], []>} : vector<32x8xf32>, vector<8x16xf32>, vector<32x16xf32> -> vector<32x16xf32>
    %c0_20 = arith.constant 0 : index
    %c0_21 = arith.constant 0 : index
    %28 = vector.load %arg5[%c0_20, %c0_21] : memref<32x1xf32, #tpu.memory_space<vmem>>, vector<32x1xf32>
    %29 = vector.broadcast %28 : vector<32x1xf32> to vector<32x16xf32>
    %30 = vector.broadcast %25 : vector<1x16xf32> to vector<32x16xf32>
    %31 = arith.mulf %29, %30 : vector<32x16xf32>
    %32 = arith.addf %27, %31 : vector<32x16xf32>
    %c0_22 = arith.constant 0 : index
    %c0_23 = arith.constant 0 : index
    %33 = vector.load %arg7[%c0_22, %c0_23] : memref<32x1xf32, #tpu.memory_space<vmem>>, vector<32x1xf32>
    %34 = vector.broadcast %33 : vector<32x1xf32> to vector<32x16xf32>
    %35 = arith.addf %32, %34 : vector<32x16xf32>
    %cst_24 = arith.constant 0.000000e+00 : f32
    %36 = vector.broadcast %cst_24 : f32 to vector<32x16xf32>
    %37 = arith.maximumf %35, %36 : vector<32x16xf32>
    %c0_25 = arith.constant 0 : index
    %c0_26 = arith.constant 0 : index
    %38 = vector.load %arg8[%c0_25, %c0_26] : memref<32x32xf32, #tpu.memory_space<vmem>>, vector<32x32xf32>
    %cst_27 = arith.constant dense<0.000000e+00> : vector<32x16xf32>
    %39 = tpu.matmul %38, %37, %cst_27 {dimension_numbers = #tpu.dot_dimension_numbers<[1], [0], [0], [1], [0, 0, 1, 1], [], []>} : vector<32x32xf32>, vector<32x16xf32>, vector<32x16xf32> -> vector<32x16xf32>
    %c0_28 = arith.constant 0 : index
    %c0_29 = arith.constant 0 : index
    %40 = vector.load %arg9[%c0_28, %c0_29] : memref<32x1xf32, #tpu.memory_space<vmem>>, vector<32x1xf32>
    %41 = vector.broadcast %40 : vector<32x1xf32> to vector<32x16xf32>
    %42 = arith.addf %39, %41 : vector<32x16xf32>
    %cst_30 = arith.constant 0.000000e+00 : f32
    %43 = vector.broadcast %cst_30 : f32 to vector<32x16xf32>
    %44 = arith.maximumf %42, %43 : vector<32x16xf32>
    %c0_31 = arith.constant 0 : index
    %c0_32 = arith.constant 0 : index
    %45 = vector.load %arg10[%c0_31, %c0_32] : memref<1x32xf32, #tpu.memory_space<vmem>>, vector<1x32xf32>
    %cst_33 = arith.constant dense<0.000000e+00> : vector<1x16xf32>
    %46 = tpu.matmul %45, %44, %cst_33 {dimension_numbers = #tpu.dot_dimension_numbers<[1], [0], [0], [1], [0, 0, 1, 1], [], []>} : vector<1x32xf32>, vector<32x16xf32>, vector<1x16xf32> -> vector<1x16xf32>
    %c0_34 = arith.constant 0 : index
    %c0_35 = arith.constant 0 : index
    %47 = vector.load %arg11[%c0_34, %c0_35] : memref<1x1xf32, #tpu.memory_space<vmem>>, vector<1x1xf32>
    %48 = vector.broadcast %47 : vector<1x1xf32> to vector<1x16xf32>
    %49 = arith.addf %46, %48 : vector<1x16xf32>
    %50 = arith.negf %49 : vector<1x16xf32>
    %51 = math.exp %50 : vector<1x16xf32>
    %cst_36 = arith.constant 1.000000e+00 : f32
    %52 = vector.broadcast %cst_36 : f32 to vector<1x16xf32>
    %53 = arith.addf %52, %51 : vector<1x16xf32>
    %54 = arith.divf %52, %53 : vector<1x16xf32>
    %55 = arith.mulf %54, %9 : vector<1x16xf32>
    %cst_37 = arith.constant dense<0.000000e+00> : vector<1x8xf32>
    %56 = tpu.matmul %55, %23, %cst_37 {dimension_numbers = #tpu.dot_dimension_numbers<[1], [0], [0], [1], [0, 0, 1, 1], [], []>} : vector<1x16xf32>, vector<16x8xf32>, vector<1x8xf32> -> vector<1x8xf32>
    %cst_38 = arith.constant 0.000000e+00 : f32
    %57 = vector.broadcast %cst_38 : f32 to vector<1x8xf32>
    %58 = arith.subf %56, %57 : vector<1x8xf32>
    %cst_39 = arith.constant 1.000000e+00 : f32
    %59 = vector.broadcast %cst_39 : f32 to vector<1x8xf32>
    %60 = arith.divf %58, %59 : vector<1x8xf32>
    %c0_40 = arith.constant 0 : index
    %c0_41 = arith.constant 0 : index
    %61 = vector.load %arg13[%c0_40, %c0_41] : memref<32x8xf32, #tpu.memory_space<vmem>>, vector<32x8xf32>
    %cst_42 = arith.constant dense<0.000000e+00> : vector<32x8xf32>
    %62 = tpu.matmul %61, %3, %cst_42 {dimension_numbers = #tpu.dot_dimension_numbers<[1], [0], [0], [1], [0, 0, 1, 1], [], []>} : vector<32x8xf32>, vector<8x8xf32>, vector<32x8xf32> -> vector<32x8xf32>
    %c0_43 = arith.constant 0 : index
    %c0_44 = arith.constant 0 : index
    %63 = vector.load %arg12[%c0_43, %c0_44] : memref<32x1xf32, #tpu.memory_space<vmem>>, vector<32x1xf32>
    %64 = vector.broadcast %63 : vector<32x1xf32> to vector<32x8xf32>
    %65 = vector.broadcast %7 : vector<1x8xf32> to vector<32x8xf32>
    %66 = arith.mulf %64, %65 : vector<32x8xf32>
    %67 = arith.addf %62, %66 : vector<32x8xf32>
    %c0_45 = arith.constant 0 : index
    %c0_46 = arith.constant 0 : index
    %68 = vector.load %arg14[%c0_45, %c0_46] : memref<32x1xf32, #tpu.memory_space<vmem>>, vector<32x1xf32>
    %69 = vector.broadcast %68 : vector<32x1xf32> to vector<32x8xf32>
    %70 = vector.broadcast %60 : vector<1x8xf32> to vector<32x8xf32>
    %71 = arith.mulf %69, %70 : vector<32x8xf32>
    %72 = arith.addf %67, %71 : vector<32x8xf32>
    %c0_47 = arith.constant 0 : index
    %c0_48 = arith.constant 0 : index
    %73 = vector.load %arg15[%c0_47, %c0_48] : memref<32x1xf32, #tpu.memory_space<vmem>>, vector<32x1xf32>
    %74 = vector.broadcast %73 : vector<32x1xf32> to vector<32x8xf32>
    %75 = arith.addf %72, %74 : vector<32x8xf32>
    %cst_49 = arith.constant 0.000000e+00 : f32
    %76 = vector.broadcast %cst_49 : f32 to vector<32x8xf32>
    %77 = arith.maximumf %75, %76 : vector<32x8xf32>
    %c0_50 = arith.constant 0 : index
    %c0_51 = arith.constant 0 : index
    %78 = vector.load %arg16[%c0_50, %c0_51] : memref<8x32xf32, #tpu.memory_space<vmem>>, vector<8x32xf32>
    %cst_52 = arith.constant dense<0.000000e+00> : vector<8x8xf32>
    %79 = tpu.matmul %78, %77, %cst_52 {dimension_numbers = #tpu.dot_dimension_numbers<[1], [0], [0], [1], [0, 0, 1, 1], [], []>} : vector<8x32xf32>, vector<32x8xf32>, vector<8x8xf32> -> vector<8x8xf32>
    %c0_53 = arith.constant 0 : index
    %c0_54 = arith.constant 0 : index
    %80 = vector.load %arg17[%c0_53, %c0_54] : memref<8x1xf32, #tpu.memory_space<vmem>>, vector<8x1xf32>
    %81 = vector.broadcast %80 : vector<8x1xf32> to vector<8x8xf32>
    %82 = arith.addf %79, %81 : vector<8x8xf32>
    %cst_55 = arith.constant 0.000000e+00 : f32
    %83 = vector.broadcast %cst_55 : f32 to vector<8x8xf32>
    %84 = arith.maximumf %82, %83 : vector<8x8xf32>
    %85 = math.tanh %84 : vector<8x8xf32>
    %c0_56 = arith.constant 0 : index
    %c0_57 = arith.constant 0 : index
    %86 = vector.load %arg23[%c0_56, %c0_57] : memref<8x8xf32, #tpu.memory_space<vmem>>, vector<8x8xf32>
    tpu.vector_store %arg23[%c0_56, %c0_57], %85 {strides = array<i32>} : memref<8x8xf32, #tpu.memory_space<vmem>>, vector<8x8xf32>,
    %c0_58 = arith.constant 0 : index
    %c0_59 = arith.constant 0 : index
    %87 = vector.load %arg18[%c0_58, %c0_59] : memref<16x8xf32, #tpu.memory_space<vmem>>, vector<16x8xf32>
    %cst_60 = arith.constant dense<0.000000e+00> : vector<16x8xf32>
    %88 = tpu.matmul %87, %85, %cst_60 {dimension_numbers = #tpu.dot_dimension_numbers<[1], [0], [0], [1], [0, 0, 1, 1], [], []>} : vector<16x8xf32>, vector<8x8xf32>, vector<16x8xf32> -> vector<16x8xf32>
    %c0_61 = arith.constant 0 : index
    %c0_62 = arith.constant 0 : index
    %89 = vector.load %arg19[%c0_61, %c0_62] : memref<16x1xf32, #tpu.memory_space<vmem>>, vector<16x1xf32>
    %90 = vector.broadcast %89 : vector<16x1xf32> to vector<16x8xf32>
    %91 = arith.addf %88, %90 : vector<16x8xf32>
    %cst_63 = arith.constant 0.000000e+00 : f32
    %92 = vector.broadcast %cst_63 : f32 to vector<16x8xf32>
    %93 = arith.maximumf %91, %92 : vector<16x8xf32>
    %c0_64 = arith.constant 0 : index
    %c0_65 = arith.constant 0 : index
    %94 = vector.load %arg20[%c0_64, %c0_65] : memref<1x16xf32, #tpu.memory_space<vmem>>, vector<1x16xf32>
    %cst_66 = arith.constant dense<0.000000e+00> : vector<1x8xf32>
    %95 = tpu.matmul %94, %93, %cst_66 {dimension_numbers = #tpu.dot_dimension_numbers<[1], [0], [0], [1], [0, 0, 1, 1], [], []>} : vector<1x16xf32>, vector<16x8xf32>, vector<1x8xf32> -> vector<1x8xf32>
    %c0_67 = arith.constant 0 : index
    %c0_68 = arith.constant 0 : index
    %96 = vector.load %arg21[%c0_67, %c0_68] : memref<1x1xf32, #tpu.memory_space<vmem>>, vector<1x1xf32>
    %97 = vector.broadcast %96 : vector<1x1xf32> to vector<1x8xf32>
    %98 = arith.addf %95, %97 : vector<1x8xf32>
    %99 = arith.negf %98 : vector<1x8xf32>
    %100 = math.exp %99 : vector<1x8xf32>
    %cst_69 = arith.constant 1.000000e+00 : f32
    %101 = vector.broadcast %cst_69 : f32 to vector<1x8xf32>
    %102 = arith.addf %101, %100 : vector<1x8xf32>
    %103 = arith.divf %101, %102 : vector<1x8xf32>
    %c0_70 = arith.constant 0 : index
    %c0_71 = arith.constant 0 : index
    %c0_72 = arith.constant 0 : index
    %104 = vector.load %arg22[%c0_70, %c0_71, %c0_72] : memref<1x1x8xf32, #tpu.memory_space<vmem>>, vector<1x1x8xf32>
    %105 = vector.shape_cast %104 : vector<1x1x8xf32> to vector<1x8xf32>
    %106 = vector.shape_cast %103 : vector<1x8xf32> to vector<1x1x8xf32>
    tpu.vector_store %arg22[%c0_70, %c0_71, %c0_72], %106 {strides = array<i32>} : memref<1x1x8xf32, #tpu.memory_space<vmem>>, vector<1x1x8xf32>,
    return
  }
  func.func @transform_0(%arg0: i32) -> (i32, i32, i32) {
    %c0_i32 = arith.constant 0 : i32
    %c0_i32_0 = arith.constant 0 : i32
    %c0_i32_1 = arith.constant 0 : i32
    return %arg0, %c0_i32, %c0_i32_0 : i32, i32, i32
  }
  func.func @transform_1(%arg0: i32) -> (i32, i32, i32) {
    %c0_i32 = arith.constant 0 : i32
    %c0_i32_0 = arith.constant 0 : i32
    %c0_i32_1 = arith.constant 0 : i32
    return %arg0, %c0_i32, %c0_i32_0 : i32, i32, i32
  }
  func.func @transform_2(%arg0: i32) -> (i32, i32, i32) {
    %c0_i32 = arith.constant 0 : i32
    %c0_i32_0 = arith.constant 0 : i32
    %c0_i32_1 = arith.constant 0 : i32
    return %arg0, %c0_i32, %c0_i32_0 : i32, i32, i32
  }
  func.func @transform_3(%arg0: i32) -> (i32, i32, i32) {
    %c0_i32 = arith.constant 0 : i32
    %c0_i32_0 = arith.constant 0 : i32
    %c0_i32_1 = arith.constant 0 : i32
    return %arg0, %c0_i32, %c0_i32_0 : i32, i32, i32
  }
  func.func @transform_4(%arg0: i32) -> (i32, i32) {
    %c0_i32 = arith.constant 0 : i32
    %c0_i32_0 = arith.constant 0 : i32
    %c0_i32_1 = arith.constant 0 : i32
    return %c0_i32, %c0_i32_0 : i32, i32
  }
  func.func @transform_5(%arg0: i32) -> (i32, i32) {
    %c0_i32 = arith.constant 0 : i32
    %c0_i32_0 = arith.constant 0 : i32
    %c0_i32_1 = arith.constant 0 : i32
    return %c0_i32, %c0_i32_0 : i32, i32
  }
  func.func @transform_6(%arg0: i32) -> (i32, i32) {
    %c0_i32 = arith.constant 0 : i32
    %c0_i32_0 = arith.constant 0 : i32
    %c0_i32_1 = arith.constant 0 : i32
    return %c0_i32, %c0_i32_0 : i32, i32
  }
  func.func @transform_7(%arg0: i32) -> (i32, i32) {
    %c0_i32 = arith.constant 0 : i32
    %c0_i32_0 = arith.constant 0 : i32
    %c0_i32_1 = arith.constant 0 : i32
    return %c0_i32, %c0_i32_0 : i32, i32
  }
  func.func @transform_8(%arg0: i32) -> (i32, i32) {
    %c0_i32 = arith.constant 0 : i32
    %c0_i32_0 = arith.constant 0 : i32
    %c0_i32_1 = arith.constant 0 : i32
    return %c0_i32, %c0_i32_0 : i32, i32
  }
  func.func @transform_9(%arg0: i32) -> (i32, i32) {
    %c0_i32 = arith.constant 0 : i32
    %c0_i32_0 = arith.constant 0 : i32
    %c0_i32_1 = arith.constant 0 : i32
    return %c0_i32, %c0_i32_0 : i32, i32
  }
  func.func @transform_10(%arg0: i32) -> (i32, i32) {
    %c0_i32 = arith.constant 0 : i32
    %c0_i32_0 = arith.constant 0 : i32
    %c0_i32_1 = arith.constant 0 : i32
    return %c0_i32, %c0_i32_0 : i32, i32
  }
  func.func @transform_11(%arg0: i32) -> (i32, i32) {
    %c0_i32 = arith.constant 0 : i32
    %c0_i32_0 = arith.constant 0 : i32
    %c0_i32_1 = arith.constant 0 : i32
    return %c0_i32, %c0_i32_0 : i32, i32
  }
  func.func @transform_12(%arg0: i32) -> (i32, i32) {
    %c0_i32 = arith.constant 0 : i32
    %c0_i32_0 = arith.constant 0 : i32
    %c0_i32_1 = arith.constant 0 : i32
    return %c0_i32, %c0_i32_0 : i32, i32
  }
  func.func @transform_13(%arg0: i32) -> (i32, i32) {
    %c0_i32 = arith.constant 0 : i32
    %c0_i32_0 = arith.constant 0 : i32
    %c0_i32_1 = arith.constant 0 : i32
    return %c0_i32, %c0_i32_0 : i32, i32
  }
  func.func @transform_14(%arg0: i32) -> (i32, i32) {
    %c0_i32 = arith.constant 0 : i32
    %c0_i32_0 = arith.constant 0 : i32
    %c0_i32_1 = arith.constant 0 : i32
    return %c0_i32, %c0_i32_0 : i32, i32
  }
  func.func @transform_15(%arg0: i32) -> (i32, i32) {
    %c0_i32 = arith.constant 0 : i32
    %c0_i32_0 = arith.constant 0 : i32
    %c0_i32_1 = arith.constant 0 : i32
    return %c0_i32, %c0_i32_0 : i32, i32
  }
  func.func @transform_16(%arg0: i32) -> (i32, i32) {
    %c0_i32 = arith.constant 0 : i32
    %c0_i32_0 = arith.constant 0 : i32
    %c0_i32_1 = arith.constant 0 : i32
    return %c0_i32, %c0_i32_0 : i32, i32
  }
  func.func @transform_17(%arg0: i32) -> (i32, i32) {
    %c0_i32 = arith.constant 0 : i32
    %c0_i32_0 = arith.constant 0 : i32
    %c0_i32_1 = arith.constant 0 : i32
    return %c0_i32, %c0_i32_0 : i32, i32
  }
  func.func @transform_18(%arg0: i32) -> (i32, i32) {
    %c0_i32 = arith.constant 0 : i32
    %c0_i32_0 = arith.constant 0 : i32
    %c0_i32_1 = arith.constant 0 : i32
    return %c0_i32, %c0_i32_0 : i32, i32
  }
  func.func @transform_19(%arg0: i32) -> (i32, i32) {
    %c0_i32 = arith.constant 0 : i32
    %c0_i32_0 = arith.constant 0 : i32
    %c0_i32_1 = arith.constant 0 : i32
    return %c0_i32, %c0_i32_0 : i32, i32
  }
  func.func @transform_20(%arg0: i32) -> (i32, i32) {
    %c0_i32 = arith.constant 0 : i32
    %c0_i32_0 = arith.constant 0 : i32
    %c0_i32_1 = arith.constant 0 : i32
    return %c0_i32, %c0_i32_0 : i32, i32
  }
  func.func @transform_21(%arg0: i32) -> (i32, i32, i32) {
    %c0_i32 = arith.constant 0 : i32
    %c0_i32_0 = arith.constant 0 : i32
    %c0_i32_1 = arith.constant 0 : i32
    return %arg0, %c0_i32, %c0_i32_0 : i32, i32, i32
  }
}

</mosaic_0001>

<llo_original>
// kernel: air_mprnn_forward.1
$region0: #{air_mprnn_forward.1}
  #allocation0 [shape = 'u32[]', space=smem, size = 0x4, offset = 0x4, fixed_abs, tag = 'smem constant byte address 0x4 - core index']
  #allocation1 [shape = 'u32[144,128]{1,0:T(1,128)}', space=vmem, size = 0x12000, scoped, tag = 'internal scratch']
  #allocation2 [shape = 'f32[8,8]{1,0:T(8,128)}', space=vmem, size = 0x1000, scoped, tag = 'scratch operand']
  #allocation3 [shape = 'f32[1,1]{1,0:T(1,128)S(1)}', space=vmem, size = 0x200, scoped, tag = 'scoped memory for air_mprnn_forward.1']
  #allocation4 [shape = 'f32[1,1]{1,0:T(1,128)S(1)}', space=vmem, size = 0x200, scoped, tag = 'scoped memory for air_mprnn_forward.1']
  %s0 = inlined_call_operand.vmem [shape: f32[10,2,8], index: 0, kind: input, shape index: {}]
  %s1 = inlined_call_operand.vmem [shape: f32[10,1,16], index: 1, kind: input, shape index: {}]
  %s2 = inlined_call_operand.vmem [shape: s32[10,1,16], index: 2, kind: input, shape index: {}]
  %s3 = inlined_call_operand.vmem [shape: s32[10,16,1], index: 3, kind: input, shape index: {}]
  %s4 = inlined_call_operand.vmem [shape: f32[32,1], index: 4, kind: input, shape index: {}]
  %s5 = inlined_call_operand.vmem [shape: f32[32,8], index: 5, kind: input, shape index: {}]
  %s6 = inlined_call_operand.vmem [shape: f32[32,1], index: 6, kind: input, shape index: {}]
  %s7 = inlined_call_operand.vmem [shape: f32[32,32], index: 7, kind: input, shape index: {}]
  %s8 = inlined_call_operand.vmem [shape: f32[32,1], index: 8, kind: input, shape index: {}]
  %s9 = inlined_call_operand.vmem [shape: f32[1,32], index: 9, kind: input, shape index: {}]
  %s10 = inlined_call_operand.<no memory space> [shape: f32[1,1], index: 10, kind: input, shape index: {}]
  %s11 = inlined_call_operand.vmem [shape: f32[32,1], index: 11, kind: input, shape index: {}]
  %s12 = inlined_call_operand.vmem [shape: f32[32,8], index: 12, kind: input, shape index: {}]
  %s13 = inlined_call_operand.vmem [shape: f32[32,1], index: 13, kind: input, shape index: {}]
  %s14 = inlined_call_operand.vmem [shape: f32[32,1], index: 14, kind: input, shape index: {}]
  %s15 = inlined_call_operand.vmem [shape: f32[8,32], index: 15, kind: input, shape index: {}]
  %s16 = inlined_call_operand.vmem [shape: f32[8,1], index: 16, kind: input, shape index: {}]
  %s17 = inlined_call_operand.vmem [shape: f32[16,8], index: 17, kind: input, shape index: {}]
  %s18 = inlined_call_operand.vmem [shape: f32[16,1], index: 18, kind: input, shape index: {}]
  %s19 = inlined_call_operand.vmem [shape: f32[1,16], index: 19, kind: input, shape index: {}]
  %s20 = inlined_call_operand.<no memory space> [shape: f32[1,1], index: 20, kind: input, shape index: {}]
  %s21 = inlined_call_operand.vmem [shape: f32[10,1,8], index: 21, kind: output, shape index: {}]
  %s22 = sld [smem:[#allocation0]]
  $region121: #{air_mprnn_forward.1} parent=0
    _
  %s24 = ssub.s32 1, %s22
  %s25 = scalar_select 0, %s24, %s22
  %v26 = vstv %s10
  %27 = vst [vmem:[#allocation3] sm:$0x1] %v26
  %v28 = vstv %s20
  %29 = vst [vmem:[#allocation4] sm:$0x1] %v28
  loop: start=0, step=1, limit=12
  $region2: #{air_mprnn_forward.1} parent=0 // loop_pre_header
    _
  $region3: #{air_mprnn_forward.1} parent=0 // loop_header
    %s31 = sphi 0, %s35
    %p32 = scmp.ge.s32.totalorder %s31, 12
    %s41 = sphi 0, %s43
    %s44 = sphi 0, %s41
    %s45 = sphi 0, %s44
    %s61 = sphi 0, %s45
    %s67 = sphi 0, %s69
    %s70 = sphi 0, %s67
    %s71 = sphi 0, %s70
    %s87 = sphi 0, %s71
    %s93 = sphi 0, %s95
    %s96 = sphi 0, %s93
    %s97 = sphi 0, %s96
    %s113 = sphi 0, %s97
    %s119 = sphi 0, %s121
    %s122 = sphi 0, %s119
    %s123 = sphi 0, %s122
    %s139 = sphi 0, %s123
    %s143 = sphi 0, %s143
    %s145 = sphi 0, %s143
    %s146 = sphi 0, %s145
    %s160 = sphi 0, %s146
    %s164 = sphi 0, %s164
    %s166 = sphi 0, %s164
    %s167 = sphi 0, %s166
    %s181 = sphi 0, %s167
    %s185 = sphi 0, %s185
    %s187 = sphi 0, %s185
    %s188 = sphi 0, %s187
    %s202 = sphi 0, %s188
    %s206 = sphi 0, %s206
    %s208 = sphi 0, %s206
    %s209 = sphi 0, %s208
    %s223 = sphi 0, %s209
    %s227 = sphi 0, %s227
    %s229 = sphi 0, %s227
    %s230 = sphi 0, %s229
    %s244 = sphi 0, %s230
    %s248 = sphi 0, %s248
    %s250 = sphi 0, %s248
    %s251 = sphi 0, %s250
    %s265 = sphi 0, %s251
    %s269 = sphi 0, %s269
    %s271 = sphi 0, %s269
    %s272 = sphi 0, %s271
    %s286 = sphi 0, %s272
    %s290 = sphi 0, %s290
    %s292 = sphi 0, %s290
    %s293 = sphi 0, %s292
    %s307 = sphi 0, %s293
    %s311 = sphi 0, %s311
    %s313 = sphi 0, %s311
    %s314 = sphi 0, %s313
    %s328 = sphi 0, %s314
    %s332 = sphi 0, %s332
    %s334 = sphi 0, %s332
    %s335 = sphi 0, %s334
    %s349 = sphi 0, %s335
    %s353 = sphi 0, %s353
    %s355 = sphi 0, %s353
    %s356 = sphi 0, %s355
    %s370 = sphi 0, %s356
    %s374 = sphi 0, %s374
    %s376 = sphi 0, %s374
    %s377 = sphi 0, %s376
    %s391 = sphi 0, %s377
    %s395 = sphi 0, %s395
    %s397 = sphi 0, %s395
    %s398 = sphi 0, %s397
    %s412 = sphi 0, %s398
    %s416 = sphi 0, %s416
    %s418 = sphi 0, %s416
    %s419 = sphi 0, %s418
    %s433 = sphi 0, %s419
    %s437 = sphi 0, %s437
    %s439 = sphi 0, %s437
    %s440 = sphi 0, %s439
    %s454 = sphi 0, %s440
    %s458 = sphi 0, %s458
    %s460 = sphi 0, %s458
    %s461 = sphi 0, %s460
    %s475 = sphi 0, %s461
    %s479 = sphi 0, %s479
    %s481 = sphi 0, %s479
    %s482 = sphi 0, %s481
    %s496 = sphi 0, %s482
    %s502 = sphi 0, %s504
    %s505 = sphi 0, %s502
    %s506 = sphi 0, %s505
    %s522 = sphi 0, %s506
  $region4: #{air_mprnn_forward.1} parent=0 // loop_header_branch
    %34 = sbr.rel (%p32) target = $region8
  $region5: #{air_mprnn_forward.1} parent=0 // loop_body
    %s36 = ssub.s32 %s31, 1
    %s37 = ssub.s32 %s31, 2
    %s38 = sadd.s32 %s31, 1
    %s39 = ssub.s32 %s31, %s38
    %p40 = scmp.eq.s32.totalorder %s39, 0
    %s42 = sadd.s32 %s41, 1
    %s43 = scalar_select %p40, %s41, %s42
    %p46 = pneg %p40
    %p47 = scmp.eq.s32.totalorder %s31, 9
    %p48 = por %p46, %p47
    %p49 = scmp.ne.s32.totalorder %s41, %s44
    %p50 = scmp.eq.s32.totalorder %s31, 0
    %p51 = por %p49, %p50
    %p52 = scmp.ne.s32.totalorder %s41, %s44
    %p53 = scmp.eq.s32.totalorder %s36, 9
    %p54 = por %p52, %p53
    %p55 = scmp.ne.s32.totalorder %s44, %s45
    %p56 = scmp.eq.s32.totalorder %s36, 0
    %p57 = por %p55, %p56
    %p58 = scmp.ne.s32.totalorder %s44, %s45
    %p59 = scmp.eq.s32.totalorder %s37, 9
    %p60 = por %p58, %p59
    %p62 = scmp.ne.s32.totalorder %s45, %s61
    %p63 = scmp.eq.s32.totalorder %s37, 0
    %p64 = por %p62, %p63
    %s65 = ssub.s32 %s31, %s38
    %p66 = scmp.eq.s32.totalorder %s65, 0
    %s68 = sadd.s32 %s67, 1
    %s69 = scalar_select %p66, %s67, %s68
    %p72 = pneg %p66
    %p73 = scmp.eq.s32.totalorder %s31, 9
    %p74 = por %p72, %p73
    %p75 = scmp.ne.s32.totalorder %s67, %s70
    %p76 = scmp.eq.s32.totalorder %s31, 0
    %p77 = por %p75, %p76
    %p78 = scmp.ne.s32.totalorder %s67, %s70
    %p79 = scmp.eq.s32.totalorder %s36, 9
    %p80 = por %p78, %p79
    %p81 = scmp.ne.s32.totalorder %s70, %s71
    %p82 = scmp.eq.s32.totalorder %s36, 0
    %p83 = por %p81, %p82
    %p84 = scmp.ne.s32.totalorder %s70, %s71
    %p85 = scmp.eq.s32.totalorder %s37, 9
    %p86 = por %p84, %p85
    %p88 = scmp.ne.s32.totalorder %s71, %s87
    %p89 = scmp.eq.s32.totalorder %s37, 0
    %p90 = por %p88, %p89
    %s91 = ssub.s32 %s31, %s38
    %p92 = scmp.eq.s32.totalorder %s91, 0
    %s94 = sadd.s32 %s93, 1
    %s95 = scalar_select %p92, %s93, %s94
    %p98 = pneg %p92
    %p99 = scmp.eq.s32.totalorder %s31, 9
    %p100 = por %p98, %p99
    %p101 = scmp.ne.s32.totalorder %s93, %s96
    %p102 = scmp.eq.s32.totalorder %s31, 0
    %p103 = por %p101, %p102
    %p104 = scmp.ne.s32.totalorder %s93, %s96
    %p105 = scmp.eq.s32.totalorder %s36, 9
    %p106 = por %p104, %p105
    %p107 = scmp.ne.s32.totalorder %s96, %s97
    %p108 = scmp.eq.s32.totalorder %s36, 0
    %p109 = por %p107, %p108
    %p110 = scmp.ne.s32.totalorder %s96, %s97
    %p111 = scmp.eq.s32.totalorder %s37, 9
    %p112 = por %p110, %p111
    %p114 = scmp.ne.s32.totalorder %s97, %s113
    %p115 = scmp.eq.s32.totalorder %s37, 0
    %p116 = por %p114, %p115
    %s117 = ssub.s32 %s31, %s38
    %p118 = scmp.eq.s32.totalorder %s117, 0
    %s120 = sadd.s32 %s119, 1
    %s121 = scalar_select %p118, %s119, %s120
    %p124 = pneg %p118
    %p125 = scmp.eq.s32.totalorder %s31, 9
    %p126 = por %p124, %p125
    %p127 = scmp.ne.s32.totalorder %s119, %s122
    %p128 = scmp.eq.s32.totalorder %s31, 0
    %p129 = por %p127, %p128
    %p130 = scmp.ne.s32.totalorder %s119, %s122
    %p131 = scmp.eq.s32.totalorder %s36, 9
    %p132 = por %p130, %p131
    %p133 = scmp.ne.s32.totalorder %s122, %s123
    %p134 = scmp.eq.s32.totalorder %s36, 0
    %p135 = por %p133, %p134
    %p136 = scmp.ne.s32.totalorder %s122, %s123
    %p137 = scmp.eq.s32.totalorder %s37, 9
    %p138 = por %p136, %p137
    %p140 = scmp.ne.s32.totalorder %s123, %s139
    %p141 = scmp.eq.s32.totalorder %s37, 0
    %p142 = por %p140, %p141
    %s144 = sadd.s32 %s143, 1
    %p147 = scmp.eq.s32.totalorder %s31, 9
    %p148 = scmp.ne.s32.totalorder %s143, %s145
    %p149 = scmp.eq.s32.totalorder %s31, 0
    %p150 = por %p148, %p149
    %p151 = scmp.ne.s32.totalorder %s143, %s145
    %p152 = scmp.eq.s32.totalorder %s36, 9
    %p153 = por %p151, %p152
    %p154 = scmp.ne.s32.totalorder %s145, %s146
    %p155 = scmp.eq.s32.totalorder %s36, 0
    %p156 = por %p154, %p155
    %p157 = scmp.ne.s32.totalorder %s145, %s146
    %p158 = scmp.eq.s32.totalorder %s37, 9
    %p159 = por %p157, %p158
    %p161 = scmp.ne.s32.totalorder %s146, %s160
    %p162 = scmp.eq.s32.totalorder %s37, 0
    %p163 = por %p161, %p162
    %s165 = sadd.s32 %s164, 1
    %p168 = scmp.eq.s32.totalorder %s31, 9
    %p169 = scmp.ne.s32.totalorder %s164, %s166
    %p170 = scmp.eq.s32.totalorder %s31, 0
    %p171 = por %p169, %p170
    %p172 = scmp.ne.s32.totalorder %s164, %s166
    %p173 = scmp.eq.s32.totalorder %s36, 9
    %p174 = por %p172, %p173
    %p175 = scmp.ne.s32.totalorder %s166, %s167
    %p176 = scmp.eq.s32.totalorder %s36, 0
    %p177 = por %p175, %p176
    %p178 = scmp.ne.s32.totalorder %s166, %s167
    %p179 = scmp.eq.s32.totalorder %s37, 9
    %p180 = por %p178, %p179
    %p182 = scmp.ne.s32.totalorder %s167, %s181
    %p183 = scmp.eq.s32.totalorder %s37, 0
    %p184 = por %p182, %p183
    %s186 = sadd.s32 %s185, 1
    %p189 = scmp.eq.s32.totalorder %s31, 9
    %p190 = scmp.ne.s32.totalorder %s185, %s187
    %p191 = scmp.eq.s32.totalorder %s31, 0
    %p192 = por %p190, %p191
    %p193 = scmp.ne.s32.totalorder %s185, %s187
    %p194 = scmp.eq.s32.totalorder %s36, 9
    %p195 = por %p193, %p194
    %p196 = scmp.ne.s32.totalorder %s187, %s188
    %p197 = scmp.eq.s32.totalorder %s36, 0
    %p198 = por %p196, %p197
    %p199 = scmp.ne.s32.totalorder %s187, %s188
    %p200 = scmp.eq.s32.totalorder %s37, 9
    %p201 = por %p199, %p200
    %p203 = scmp.ne.s32.totalorder %s188, %s202
    %p204 = scmp.eq.s32.totalorder %s37, 0
    %p205 = por %p203, %p204
    %s207 = sadd.s32 %s206, 1
    %p210 = scmp.eq.s32.totalorder %s31, 9
    %p211 = scmp.ne.s32.totalorder %s206, %s208
    %p212 = scmp.eq.s32.totalorder %s31, 0
    %p213 = por %p211, %p212
    %p214 = scmp.ne.s32.totalorder %s206, %s208
    %p215 = scmp.eq.s32.totalorder %s36, 9
    %p216 = por %p214, %p215
    %p217 = scmp.ne.s32.totalorder %s208, %s209
    %p218 = scmp.eq.s32.totalorder %s36, 0
    %p219 = por %p217, %p218
    %p220 = scmp.ne.s32.totalorder %s208, %s209
    %p221 = scmp.eq.s32.totalorder %s37, 9
    %p222 = por %p220, %p221
    %p224 = scmp.ne.s32.totalorder %s209, %s223
    %p225 = scmp.eq.s32.totalorder %s37, 0
    %p226 = por %p224, %p225
    %s228 = sadd.s32 %s227, 1
    %p231 = scmp.eq.s32.totalorder %s31, 9
    %p232 = scmp.ne.s32.totalorder %s227, %s229
    %p233 = scmp.eq.s32.totalorder %s31, 0
    %p234 = por %p232, %p233
    %p235 = scmp.ne.s32.totalorder %s227, %s229
    %p236 = scmp.eq.s32.totalorder %s36, 9
    %p237 = por %p235, %p236
    %p238 = scmp.ne.s32.totalorder %s229, %s230
    %p239 = scmp.eq.s32.totalorder %s36, 0
    %p240 = por %p238, %p239
    %p241 = scmp.ne.s32.totalorder %s229, %s230
    %p242 = scmp.eq.s32.totalorder %s37, 9
    %p243 = por %p241, %p242
    %p245 = scmp.ne.s32.totalorder %s230, %s244
    %p246 = scmp.eq.s32.totalorder %s37, 0
    %p247 = por %p245, %p246
    %s249 = sadd.s32 %s248, 1
    %p252 = scmp.eq.s32.totalorder %s31, 9
    %p253 = scmp.ne.s32.totalorder %s248, %s250
    %p254 = scmp.eq.s32.totalorder %s31, 0
    %p255 = por %p253, %p254
    %p256 = scmp.ne.s32.totalorder %s248, %s250
    %p257 = scmp.eq.s32.totalorder %s36, 9
    %p258 = por %p256, %p257
    %p259 = scmp.ne.s32.totalorder %s250, %s251
    %p260 = scmp.eq.s32.totalorder %s36, 0
    %p261 = por %p259, %p260
    %p262 = scmp.ne.s32.totalorder %s250, %s251
    %p263 = scmp.eq.s32.totalorder %s37, 9
    %p264 = por %p262, %p263
    %p266 = scmp.ne.s32.totalorder %s251, %s265
    %p267 = scmp.eq.s32.totalorder %s37, 0
    %p268 = por %p266, %p267
    %s270 = sadd.s32 %s269, 1
    %p273 = scmp.eq.s32.totalorder %s31, 9
    %p274 = scmp.ne.s32.totalorder %s269, %s271
    %p275 = scmp.eq.s32.totalorder %s31, 0
    %p276 = por %p274, %p275
    %p277 = scmp.ne.s32.totalorder %s269, %s271
    %p278 = scmp.eq.s32.totalorder %s36, 9
    %p279 = por %p277, %p278
    %p280 = scmp.ne.s32.totalorder %s271, %s272
    %p281 = scmp.eq.s32.totalorder %s36, 0
    %p282 = por %p280, %p281
    %p283 = scmp.ne.s32.totalorder %s271, %s272
    %p284 = scmp.eq.s32.totalorder %s37, 9
    %p285 = por %p283, %p284
    %p287 = scmp.ne.s32.totalorder %s272, %s286
    %p288 = scmp.eq.s32.totalorder %s37, 0
    %p289 = por %p287, %p288
    %s291 = sadd.s32 %s290, 1
    %p294 = scmp.eq.s32.totalorder %s31, 9
    %p295 = scmp.ne.s32.totalorder %s290, %s292
    %p296 = scmp.eq.s32.totalorder %s31, 0
    %p297 = por %p295, %p296
    %p298 = scmp.ne.s32.totalorder %s290, %s292
    %p299 = scmp.eq.s32.totalorder %s36, 9
    %p300 = por %p298, %p299
    %p301 = scmp.ne.s32.totalorder %s292, %s293
    %p302 = scmp.eq.s32.totalorder %s36, 0
    %p303 = por %p301, %p302
    %p304 = scmp.ne.s32.totalorder %s292, %s293
    %p305 = scmp.eq.s32.totalorder %s37, 9
    %p306 = por %p304, %p305
    %p308 = scmp.ne.s32.totalorder %s293, %s307
    %p309 = scmp.eq.s32.totalorder %s37, 0
    %p310 = por %p308, %p309
    %s312 = sadd.s32 %s311, 1
    %p315 = scmp.eq.s32.totalorder %s31, 9
    %p316 = scmp.ne.s32.totalorder %s311, %s313
    %p317 = scmp.eq.s32.totalorder %s31, 0
    %p318 = por %p316, %p317
    %p319 = scmp.ne.s32.totalorder %s311, %s313
    %p320 = scmp.eq.s32.totalorder %s36, 9
    %p321 = por %p319, %p320
    %p322 = scmp.ne.s32.totalorder %s313, %s314
    %p323 = scmp.eq.s32.totalorder %s36, 0
    %p324 = por %p322, %p323
    %p325 = scmp.ne.s32.totalorder %s313, %s314
    %p326 = scmp.eq.s32.totalorder %s37, 9
    %p327 = por %p325, %p326
    %p329 = scmp.ne.s32.totalorder %s314, %s328
    %p330 = scmp.eq.s32.totalorder %s37, 0
    %p331 = por %p329, %p330
    %s333 = sadd.s32 %s332, 1
    %p336 = scmp.eq.s32.totalorder %s31, 9
    %p337 = scmp.ne.s32.totalorder %s332, %s334
    %p338 = scmp.eq.s32.totalorder %s31, 0
    %p339 = por %p337, %p338
    %p340 = scmp.ne.s32.totalorder %s332, %s334
    %p341 = scmp.eq.s32.totalorder %s36, 9
    %p342 = por %p340, %p341
    %p343 = scmp.ne.s32.totalorder %s334, %s335
    %p344 = scmp.eq.s32.totalorder %s36, 0
    %p345 = por %p343, %p344
    %p346 = scmp.ne.s32.totalorder %s334, %s335
    %p347 = scmp.eq.s32.totalorder %s37, 9
    %p348 = por %p346, %p347
    %p350 = scmp.ne.s32.totalorder %s335, %s349
    %p351 = scmp.eq.s32.totalorder %s37, 0
    %p352 = por %p350, %p351
    %s354 = sadd.s32 %s353, 1
    %p357 = scmp.eq.s32.totalorder %s31, 9
    %p358 = scmp.ne.s32.totalorder %s353, %s355
    %p359 = scmp.eq.s32.totalorder %s31, 0
    %p360 = por %p358, %p359
    %p361 = scmp.ne.s32.totalorder %s353, %s355
    %p362 = scmp.eq.s32.totalorder %s36, 9
    %p363 = por %p361, %p362
    %p364 = scmp.ne.s32.totalorder %s355, %s356
    %p365 = scmp.eq.s32.totalorder %s36, 0
    %p366 = por %p364, %p365
    %p367 = scmp.ne.s32.totalorder %s355, %s356
    %p368 = scmp.eq.s32.totalorder %s37, 9
    %p369 = por %p367, %p368
    %p371 = scmp.ne.s32.totalorder %s356, %s370
    %p372 = scmp.eq.s32.totalorder %s37, 0
    %p373 = por %p371, %p372
    %s375 = sadd.s32 %s374, 1
    %p378 = scmp.eq.s32.totalorder %s31, 9
    %p379 = scmp.ne.s32.totalorder %s374, %s376
    %p380 = scmp.eq.s32.totalorder %s31, 0
    %p381 = por %p379, %p380
    %p382 = scmp.ne.s32.totalorder %s374, %s376
    %p383 = scmp.eq.s32.totalorder %s36, 9
    %p384 = por %p382, %p383
    %p385 = scmp.ne.s32.totalorder %s376, %s377
    %p386 = scmp.eq.s32.totalorder %s36, 0
    %p387 = por %p385, %p386
    %p388 = scmp.ne.s32.totalorder %s376, %s377
    %p389 = scmp.eq.s32.totalorder %s37, 9
    %p390 = por %p388, %p389
    %p392 = scmp.ne.s32.totalorder %s377, %s391
    %p393 = scmp.eq.s32.totalorder %s37, 0
    %p394 = por %p392, %p393
    %s396 = sadd.s32 %s395, 1
    %p399 = scmp.eq.s32.totalorder %s31, 9
    %p400 = scmp.ne.s32.totalorder %s395, %s397
    %p401 = scmp.eq.s32.totalorder %s31, 0
    %p402 = por %p400, %p401
    %p403 = scmp.ne.s32.totalorder %s395, %s397
    %p404 = scmp.eq.s32.totalorder %s36, 9
    %p405 = por %p403, %p404
    %p406 = scmp.ne.s32.totalorder %s397, %s398
    %p407 = scmp.eq.s32.totalorder %s36, 0
    %p408 = por %p406, %p407
    %p409 = scmp.ne.s32.totalorder %s397, %s398
    %p410 = scmp.eq.s32.totalorder %s37, 9
    %p411 = por %p409, %p410
    %p413 = scmp.ne.s32.totalorder %s398, %s412
    %p414 = scmp.eq.s32.totalorder %s37, 0
    %p415 = por %p413, %p414
    %s417 = sadd.s32 %s416, 1
    %p420 = scmp.eq.s32.totalorder %s31, 9
    %p421 = scmp.ne.s32.totalorder %s416, %s418
    %p422 = scmp.eq.s32.totalorder %s31, 0
    %p423 = por %p421, %p422
    %p424 = scmp.ne.s32.totalorder %s416, %s418
    %p425 = scmp.eq.s32.totalorder %s36, 9
    %p426 = por %p424, %p425
    %p427 = scmp.ne.s32.totalorder %s418, %s419
    %p428 = scmp.eq.s32.totalorder %s36, 0
    %p429 = por %p427, %p428
    %p430 = scmp.ne.s32.totalorder %s418, %s419
    %p431 = scmp.eq.s32.totalorder %s37, 9
    %p432 = por %p430, %p431
    %p434 = scmp.ne.s32.totalorder %s419, %s433
    %p435 = scmp.eq.s32.totalorder %s37, 0
    %p436 = por %p434, %p435
    %s438 = sadd.s32 %s437, 1
    %p441 = scmp.eq.s32.totalorder %s31, 9
    %p442 = scmp.ne.s32.totalorder %s437, %s439
    %p443 = scmp.eq.s32.totalorder %s31, 0
    %p444 = por %p442, %p443
    %p445 = scmp.ne.s32.totalorder %s437, %s439
    %p446 = scmp.eq.s32.totalorder %s36, 9
    %p447 = por %p445, %p446
    %p448 = scmp.ne.s32.totalorder %s439, %s440
    %p449 = scmp.eq.s32.totalorder %s36, 0
    %p450 = por %p448, %p449
    %p451 = scmp.ne.s32.totalorder %s439, %s440
    %p452 = scmp.eq.s32.totalorder %s37, 9
    %p453 = por %p451, %p452
    %p455 = scmp.ne.s32.totalorder %s440, %s454
    %p456 = scmp.eq.s32.totalorder %s37, 0
    %p457 = por %p455, %p456
    %s459 = sadd.s32 %s458, 1
    %p462 = scmp.eq.s32.totalorder %s31, 9
    %p463 = scmp.ne.s32.totalorder %s458, %s460
    %p464 = scmp.eq.s32.totalorder %s31, 0
    %p465 = por %p463, %p464
    %p466 = scmp.ne.s32.totalorder %s458, %s460
    %p467 = scmp.eq.s32.totalorder %s36, 9
    %p468 = por %p466, %p467
    %p469 = scmp.ne.s32.totalorder %s460, %s461
    %p470 = scmp.eq.s32.totalorder %s36, 0
    %p471 = por %p469, %p470
    %p472 = scmp.ne.s32.totalorder %s460, %s461
    %p473 = scmp.eq.s32.totalorder %s37, 9
    %p474 = por %p472, %p473
    %p476 = scmp.ne.s32.totalorder %s461, %s475
    %p477 = scmp.eq.s32.totalorder %s37, 0
    %p478 = por %p476, %p477
    %s480 = sadd.s32 %s479, 1
    %p483 = scmp.eq.s32.totalorder %s31, 9
    %p484 = scmp.ne.s32.totalorder %s479, %s481
    %p485 = scmp.eq.s32.totalorder %s31, 0
    %p486 = por %p484, %p485
    %p487 = scmp.ne.s32.totalorder %s479, %s481
    %p488 = scmp.eq.s32.totalorder %s36, 9
    %p489 = por %p487, %p488
    %p490 = scmp.ne.s32.totalorder %s481, %s482
    %p491 = scmp.eq.s32.totalorder %s36, 0
    %p492 = por %p490, %p491
    %p493 = scmp.ne.s32.totalorder %s481, %s482
    %p494 = scmp.eq.s32.totalorder %s37, 9
    %p495 = por %p493, %p494
    %p497 = scmp.ne.s32.totalorder %s482, %s496
    %p498 = scmp.eq.s32.totalorder %s37, 0
    %p499 = por %p497, %p498
    %s500 = ssub.s32 %s31, %s38
    %p501 = scmp.eq.s32.totalorder %s500, 0
    %s503 = sadd.s32 %s502, 1
    %s504 = scalar_select %p501, %s502, %s503
    %p507 = pneg %p501
    %p508 = scmp.eq.s32.totalorder %s31, 9
    %p509 = por %p507, %p508
    %p510 = scmp.ne.s32.totalorder %s502, %s505
    %p511 = scmp.eq.s32.totalorder %s31, 0
    %p512 = por %p510, %p511
    %p513 = scmp.ne.s32.totalorder %s502, %s505
    %p514 = scmp.eq.s32.totalorder %s36, 9
    %p515 = por %p513, %p514
    %p516 = scmp.ne.s32.totalorder %s505, %s506
    %p517 = scmp.eq.s32.totalorder %s36, 0
    %p518 = por %p516, %p517
    %p519 = scmp.ne.s32.totalorder %s505, %s506
    %p520 = scmp.eq.s32.totalorder %s37, 9
    %p521 = por %p519, %p520
    %p523 = scmp.ne.s32.totalorder %s506, %s522
    %p524 = scmp.eq.s32.totalorder %s37, 0
    %p525 = por %p523, %p524
    %p526 = scmp.le.s32.totalorder 1, %s31
    %p527 = scmp.lt.s32.totalorder %s31, 11
    %p528 = pnand %p526, %p527
    %p529 = pneg %p528
    // Predicated region
    $region9: #{air_mprnn_forward.1} parent=5 // pred_check
      _
    $region10: #{air_mprnn_forward.1} parent=5 // pred_check_branch
      %531 = sbr.rel (%p528) target = $region12
    $region11: #{air_mprnn_forward.1} parent=5 // pred_region
      %s532 = ssub.s32 %s31, 1
      // Predicated region
      $region13: #{air_mprnn_forward.1} parent=11 // pred_check
        %p533 = pneg %p156
      $region14: #{air_mprnn_forward.1} parent=11 // pred_check_branch
        %535 = sbr.rel (%p533) target = $region16
      $region15: #{air_mprnn_forward.1} parent=11 // pred_region
        _
      $region16: #{air_mprnn_forward.1} parent=11 // pred_fallthru
        _
      // Predicated region
      $region17: #{air_mprnn_forward.1} parent=11 // pred_check
        %p536 = pneg %p177
      $region18: #{air_mprnn_forward.1} parent=11 // pred_check_branch
        %538 = sbr.rel (%p536) target = $region20
      $region19: #{air_mprnn_forward.1} parent=11 // pred_region
        _
      $region20: #{air_mprnn_forward.1} parent=11 // pred_fallthru
        _
      // Predicated region
      $region21: #{air_mprnn_forward.1} parent=11 // pred_check
        %p539 = pneg %p198
      $region22: #{air_mprnn_forward.1} parent=11 // pred_check_branch
        %541 = sbr.rel (%p539) target = $region24
      $region23: #{air_mprnn_forward.1} parent=11 // pred_region
        _
      $region24: #{air_mprnn_forward.1} parent=11 // pred_fallthru
        _
      // Predicated region
      $region25: #{air_mprnn_forward.1} parent=11 // pred_check
        %p542 = pneg %p219
      $region26: #{air_mprnn_forward.1} parent=11 // pred_check_branch
        %544 = sbr.rel (%p542) target = $region28
      $region27: #{air_mprnn_forward.1} parent=11 // pred_region
        _
      $region28: #{air_mprnn_forward.1} parent=11 // pred_fallthru
        _
      // Predicated region
      $region29: #{air_mprnn_forward.1} parent=11 // pred_check
        %p545 = pneg %p240
      $region30: #{air_mprnn_forward.1} parent=11 // pred_check_branch
        %547 = sbr.rel (%p545) target = $region32
      $region31: #{air_mprnn_forward.1} parent=11 // pred_region
        _
      $region32: #{air_mprnn_forward.1} parent=11 // pred_fallthru
        _
      // Predicated region
      $region33: #{air_mprnn_forward.1} parent=11 // pred_check
        %p548 = pneg %p261
      $region34: #{air_mprnn_forward.1} parent=11 // pred_check_branch
        %550 = sbr.rel (%p548) target = $region36
      $region35: #{air_mprnn_forward.1} parent=11 // pred_region
        _
      $region36: #{air_mprnn_forward.1} parent=11 // pred_fallthru
        _
      // Predicated region
      $region37: #{air_mprnn_forward.1} parent=11 // pred_check
        %p551 = pneg %p282
      $region38: #{air_mprnn_forward.1} parent=11 // pred_check_branch
        %553 = sbr.rel (%p551) target = $region40
      $region39: #{air_mprnn_forward.1} parent=11 // pred_region
        _
      $region40: #{air_mprnn_forward.1} parent=11 // pred_fallthru
        _
      // Predicated region
      $region41: #{air_mprnn_forward.1} parent=11 // pred_check
        %p554 = pneg %p303
      $region42: #{air_mprnn_forward.1} parent=11 // pred_check_branch
        %556 = sbr.rel (%p554) target = $region44
      $region43: #{air_mprnn_forward.1} parent=11 // pred_region
        _
      $region44: #{air_mprnn_forward.1} parent=11 // pred_fallthru
        _
      // Predicated region
      $region45: #{air_mprnn_forward.1} parent=11 // pred_check
        %p557 = pneg %p324
      $region46: #{air_mprnn_forward.1} parent=11 // pred_check_branch
        %559 = sbr.rel (%p557) target = $region48
      $region47: #{air_mprnn_forward.1} parent=11 // pred_region
        _
      $region48: #{air_mprnn_forward.1} parent=11 // pred_fallthru
        _
      // Predicated region
      $region49: #{air_mprnn_forward.1} parent=11 // pred_check
        %p560 = pneg %p345
      $region50: #{air_mprnn_forward.1} parent=11 // pred_check_branch
        %562 = sbr.rel (%p560) target = $region52
      $region51: #{air_mprnn_forward.1} parent=11 // pred_region
        _
      $region52: #{air_mprnn_forward.1} parent=11 // pred_fallthru
        _
      // Predicated region
      $region53: #{air_mprnn_forward.1} parent=11 // pred_check
        %p563 = pneg %p366
      $region54: #{air_mprnn_forward.1} parent=11 // pred_check_branch
        %565 = sbr.rel (%p563) target = $region56
      $region55: #{air_mprnn_forward.1} parent=11 // pred_region
        _
      $region56: #{air_mprnn_forward.1} parent=11 // pred_fallthru
        _
      // Predicated region
      $region57: #{air_mprnn_forward.1} parent=11 // pred_check
        %p566 = pneg %p387
      $region58: #{air_mprnn_forward.1} parent=11 // pred_check_branch
        %568 = sbr.rel (%p566) target = $region60
      $region59: #{air_mprnn_forward.1} parent=11 // pred_region
        _
      $region60: #{air_mprnn_forward.1} parent=11 // pred_fallthru
        _
      // Predicated region
      $region61: #{air_mprnn_forward.1} parent=11 // pred_check
        %p569 = pneg %p408
      $region62: #{air_mprnn_forward.1} parent=11 // pred_check_branch
        %571 = sbr.rel (%p569) target = $region64
      $region63: #{air_mprnn_forward.1} parent=11 // pred_region
        _
      $region64: #{air_mprnn_forward.1} parent=11 // pred_fallthru
        _
      // Predicated region
      $region65: #{air_mprnn_forward.1} parent=11 // pred_check
        %p572 = pneg %p429
      $region66: #{air_mprnn_forward.1} parent=11 // pred_check_branch
        %574 = sbr.rel (%p572) target = $region68
      $region67: #{air_mprnn_forward.1} parent=11 // pred_region
        _
      $region68: #{air_mprnn_forward.1} parent=11 // pred_fallthru
        _
      // Predicated region
      $region69: #{air_mprnn_forward.1} parent=11 // pred_check
        %p575 = pneg %p450
      $region70: #{air_mprnn_forward.1} parent=11 // pred_check_branch
        %577 = sbr.rel (%p575) target = $region72
      $region71: #{air_mprnn_forward.1} parent=11 // pred_region
        _
      $region72: #{air_mprnn_forward.1} parent=11 // pred_fallthru
        _
      // Predicated region
      $region73: #{air_mprnn_forward.1} parent=11 // pred_check
        %p578 = pneg %p471
      $region74: #{air_mprnn_forward.1} parent=11 // pred_check_branch
        %580 = sbr.rel (%p578) target = $region76
      $region75: #{air_mprnn_forward.1} parent=11 // pred_region
        _
      $region76: #{air_mprnn_forward.1} parent=11 // pred_fallthru
        _
      // Predicated region
      $region77: #{air_mprnn_forward.1} parent=11 // pred_check
        %p581 = pneg %p492
      $region78: #{air_mprnn_forward.1} parent=11 // pred_check_branch
        %583 = sbr.rel (%p581) target = $region80
      $region79: #{air_mprnn_forward.1} parent=11 // pred_region
        _
      $region80: #{air_mprnn_forward.1} parent=11 // pred_fallthru
        _
    $region12: #{air_mprnn_forward.1} parent=5 // pred_fallthru
      _
    %p584 = scmp.lt.s32.totalorder %s31, 10
    // Predicated region
    $region81: #{air_mprnn_forward.1} parent=5 // pred_check
      %p585 = pneg %p584
    $region82: #{air_mprnn_forward.1} parent=5 // pred_check_branch
      %587 = sbr.rel (%p585) target = $region84
    $region83: #{air_mprnn_forward.1} parent=5 // pred_region
      // Predicated region
      $region85: #{air_mprnn_forward.1} parent=83 // pred_check
        %p588 = pneg %p51
      $region86: #{air_mprnn_forward.1} parent=83 // pred_check_branch
        %590 = sbr.rel (%p588) target = $region88
      $region87: #{air_mprnn_forward.1} parent=83 // pred_region
        %p591 = scmp.lt.s32.totalorder %s31, 9
        %s592 = scalar_select %p591, %s31, 9
        %s593 = smul.addr %s592, 2
        %s594 = scalar_lea.vmem %s0, %s593
      $region88: #{air_mprnn_forward.1} parent=83 // pred_fallthru
        _
      // Predicated region
      $region89: #{air_mprnn_forward.1} parent=83 // pred_check
        %p595 = pneg %p77
      $region90: #{air_mprnn_forward.1} parent=83 // pred_check_branch
        %597 = sbr.rel (%p595) target = $region92
      $region91: #{air_mprnn_forward.1} parent=83 // pred_region
        %p598 = scmp.lt.s32.totalorder %s31, 9
        %s599 = scalar_select %p598, %s31, 9
        %s600 = scalar_lea.vmem %s1, %s599
      $region92: #{air_mprnn_forward.1} parent=83 // pred_fallthru
        _
      // Predicated region
      $region93: #{air_mprnn_forward.1} parent=83 // pred_check
        %p601 = pneg %p103
      $region94: #{air_mprnn_forward.1} parent=83 // pred_check_branch
        %603 = sbr.rel (%p601) target = $region96
      $region95: #{air_mprnn_forward.1} parent=83 // pred_region
        %p604 = scmp.lt.s32.totalorder %s31, 9
        %s605 = scalar_select %p604, %s31, 9
        %s606 = scalar_lea.vmem %s2, %s605
      $region96: #{air_mprnn_forward.1} parent=83 // pred_fallthru
        _
      // Predicated region
      $region97: #{air_mprnn_forward.1} parent=83 // pred_check
        %p607 = pneg %p129
      $region98: #{air_mprnn_forward.1} parent=83 // pred_check_branch
        %609 = sbr.rel (%p607) target = $region100
      $region99: #{air_mprnn_forward.1} parent=83 // pred_region
        %p610 = scmp.lt.s32.totalorder %s31, 9
        %s611 = scalar_select %p610, %s31, 9
        %s612 = smul.addr %s611, 2
        %s613 = smul.addr %s612, 8
        %s614 = scalar_lea.vmem %s3, %s613
      $region100: #{air_mprnn_forward.1} parent=83 // pred_fallthru
        _
    $region84: #{air_mprnn_forward.1} parent=5 // pred_fallthru
      _
    %p615 = scmp.le.s32.totalorder 1, %s31
    %p616 = scmp.lt.s32.totalorder %s31, 11
    %p617 = pnand %p615, %p616
    %p618 = pneg %p617
    // Predicated region
    $region101: #{air_mprnn_forward.1} parent=5 // pred_check
      _
    $region102: #{air_mprnn_forward.1} parent=5 // pred_check_branch
      %620 = sbr.rel (%p617) target = $region104
    $region103: #{air_mprnn_forward.1} parent=5 // pred_region
      %s621 = ssub.s32 %s31, 1
      %p622 = scmp.lt.s32.totalorder %s36, 9
      %s623 = scalar_select %p622, %s36, 9
      %s624 = smul.addr %s623, 2
      %s625 = scalar_lea.vmem %s0, %s624
      %p626 = pneg %p57
      %p627 = pneg %p54
      %p628 = scmp.lt.s32.totalorder %s36, 9
      %s629 = scalar_select %p628, %s36, 9
      %s630 = scalar_lea.vmem %s1, %s629
      %p631 = pneg %p83
      %p632 = pneg %p80
      %p633 = scmp.lt.s32.totalorder %s36, 9
      %s634 = scalar_select %p633, %s36, 9
      %s635 = scalar_lea.vmem %s2, %s634
      %p636 = pneg %p109
      %p637 = pneg %p106
      %p638 = scmp.lt.s32.totalorder %s36, 9
      %s639 = scalar_select %p638, %s36, 9
      %s640 = smul.addr %s639, 2
      %s641 = smul.addr %s640, 8
      %s642 = scalar_lea.vmem %s3, %s641
      %p643 = pneg %p135
      %p644 = pneg %p132
      %p645 = pneg %p156
      %p646 = pneg %p153
      %p647 = pneg %p177
      %p648 = pneg %p174
      %p649 = pneg %p198
      %p650 = pneg %p195
      %p651 = pneg %p219
      %p652 = pneg %p216
      %p653 = pneg %p240
      %p654 = pneg %p237
      %p655 = pneg %p261
      %p656 = pneg %p258
      %p657 = pneg %p282
      %p658 = pneg %p279
      %p659 = pneg %p303
      %p660 = pneg %p300
      %p661 = pneg %p324
      %p662 = pneg %p321
      %p663 = pneg %p345
      %p664 = pneg %p342
      %p665 = pneg %p366
      %p666 = pneg %p363
      %p667 = pneg %p387
      %p668 = pneg %p384
      %p669 = pneg %p408
      %p670 = pneg %p405
      %p671 = pneg %p429
      %p672 = pneg %p426
      %p673 = pneg %p450
      %p674 = pneg %p447
      %p675 = pneg %p471
      %p676 = pneg %p468
      %p677 = pneg %p492
      %p678 = pneg %p489
      %p679 = pneg %p518
      %p680 = pneg %p515
      %p681 = scmp.lt.s32.totalorder %s36, 9
      %s682 = scalar_select %p681, %s36, 9
      %s683 = scalar_lea.vmem %s21, %s682
      %p684 = scmp.lt.s32.totalorder %s36, 9
      %s685 = scalar_select %p684, %s36, 9
      %s686 = smul.addr %s685, 2
      %s687 = scalar_lea.vmem %s0, %s686
      %p688 = scmp.lt.s32.totalorder %s36, 9
      %s689 = scalar_select %p688, %s36, 9
      %s690 = scalar_lea.vmem %s1, %s689
      %p691 = scmp.lt.s32.totalorder %s36, 9
      %s692 = scalar_select %p691, %s36, 9
      %s693 = scalar_lea.vmem %s2, %s692
      %p694 = scmp.lt.s32.totalorder %s36, 9
      %s695 = scalar_select %p694, %s36, 9
      %s696 = smul.addr %s695, 2
      %s697 = smul.addr %s696, 8
      %s698 = scalar_lea.vmem %s3, %s697
      %p699 = scmp.lt.s32.totalorder %s36, 9
      %s700 = scalar_select %p699, %s36, 9
      %s701 = scalar_lea.vmem %s21, %s700
      %p702 = scmp.eq.s32.totalorder %s36, 0
      // Predicated region
      $region105: #{air_mprnn_forward.1} parent=103 // pred_check
        %p703 = pneg %p702
      $region106: #{air_mprnn_forward.1} parent=103 // pred_check_branch
        %705 = sbr.rel (%p703) target = $region108
      $region107: #{air_mprnn_forward.1} parent=103 // pred_region
        %vm706 = vcmask 64512
        %707 = vst.msk [vmem:[#allocation2] sm:$0xff] %vm706, 0.0
      $region108: #{air_mprnn_forward.1} parent=103 // pred_fallthru
        _
      %v708 = vld [vmem:[#allocation2] sm:$0xff]
      %v709 = vld [vmem:[%s687] sm:$0x1]
      %v710 = vld [vmem:[%s687 + $0x1] sm:$0x1]
      %v711 = vld [vmem:[%s690] sm:$0x1]
      %v712 = vld [vmem:[%s693] sm:$0x1]
      %v713 = vld [vmem:[%s698] sm:$0xff]
      %v714 = vld [vmem:[%s698 + $0x8] sm:$0xff]
      %v715 = vlaneseq
      %v716 = vshrl.u32 %v715, 7
      %v717 = vlaneseq
      %v718 = vshrl.u32 %v717, 7
      %v719 = vsub.s32 0, %v718
      %v720 = vrot.slane %v712, %v719
      %vm721 = vcmp.eq.s32.totalorder %v716, %v720
      %v722 = vsel %vm721, 1, 0
      %v723 = vcvt.s32.f32 %v722
      %v724 = vlaneseq
      %v725 = vand.u32 %v724, 127
      %726 = vset.pattern.permute.xlu0 0
      %727 = vperm.xlu0 %726, %v713
      %v728 = vpop.permute.xlu0 %727
      %729 = vset.pattern.permute.xlu0 0
      %730 = vperm.xlu0 %729, %v714
      %v731 = vpop.permute.xlu0 %730
      %vm732 = vcmp.eq.s32.totalorder %v725, %v728
      %vm733 = vcmp.eq.s32.totalorder %v725, %v731
      %v734 = vsel %vm732, 1, 0
      %v735 = vsel %vm733, 1, 0
      %v736 = vcvt.s32.f32 %v734
      %v737 = vcvt.s32.f32 %v735
      %vm738 = vcmask 64512
      %v740 = vsel %vm738, %v708, 0
      %742 = vmatprep.subr.mxu0 0.0
      %743 = vmatpush1.msra.mxu0 %v723
      %744 = vmatprep.subr.mxu0 0.0
      %745 = vmatpush1.msra.mxu0 0.0
      %746 = vmatprep.subr.mxu0 0.0
      %747 = vmatpush1.msra.mxu0 0.0
      %748 = vmatprep.subr.mxu0 0.0
      %749 = vmatpush1.msra.mxu0 0.0
      %750 = vmatprep.subr.mxu0 0.0
      %751 = vmatpush1.msra.mxu0 0.0
      %752 = vmatprep.subr.mxu0 0.0
      %753 = vmatpush1.msra.mxu0 0.0
      %754 = vmatprep.subr.mxu0 0.0
      %755 = vmatpush1.msra.mxu0 0.0
      %756 = vmatprep.subr.mxu0 0.0
      %757 = vmatpush1.msra.mxu0 0.0
      %758 = vmatprep.subr.mxu0 0.0
      %759 = vmatpush1.msra.mxu0 0.0
      %760 = vmatprep.subr.mxu0 0.0
      %761 = vmatpush1.msra.mxu0 0.0
      %762 = vmatprep.subr.mxu0 0.0
      %763 = vmatpush1.msra.mxu0 0.0
      %764 = vmatprep.subr.mxu0 0.0
      %765 = vmatpush1.msra.mxu0 0.0
      %766 = vmatprep.subr.mxu0 0.0
      %767 = vmatpush1.msra.mxu0 0.0
      %768 = vmatprep.subr.mxu0 0.0
      %769 = vmatpush1.msra.mxu0 0.0
      %770 = vmatprep.subr.mxu0 0.0
      %771 = vmatpush1.msra.mxu0 0.0
      %772 = vmatprep.subr.mxu0 0.0
      %773 = vmatpush1.msra.mxu0 0.0
      %774 = vmatprep.subr.mxu0 0.0
      %775 = vmatpush1.msra.mxu0 0.0
      %776 = vmatprep.subr.mxu0 0.0
      %777 = vmatpush1.msra.mxu0 0.0
      %778 = vmatprep.subr.mxu0 0.0
      %779 = vmatpush1.msra.mxu0 0.0
      %780 = vmatprep.subr.mxu0 0.0
      %781 = vmatpush1.msra.mxu0 0.0
      %782 = vmatprep.subr.mxu0 0.0
      %783 = vmatpush1.msra.mxu0 0.0
      %784 = vmatprep.subr.mxu0 0.0
      %785 = vmatpush1.msra.mxu0 0.0
      %786 = vmatprep.subr.mxu0 0.0
      %787 = vmatpush1.msra.mxu0 0.0
      %788 = vmatprep.subr.mxu0 0.0
      %789 = vmatpush1.msra.mxu0 0.0
      %790 = vmatprep.subr.mxu0 0.0
      %791 = vmatpush1.msra.mxu0 0.0
      %792 = vmatprep.subr.mxu0 0.0
      %793 = vmatpush1.msra.mxu0 0.0
      %794 = vmatprep.subr.mxu0 0.0
      %795 = vmatpush1.msra.mxu0 0.0
      %796 = vmatprep.subr.mxu0 0.0
      %797 = vmatpush1.msra.mxu0 0.0
      %798 = vmatprep.subr.mxu0 0.0
      %799 = vmatpush1.msra.mxu0 0.0
      %800 = vmatprep.subr.mxu0 0.0
      %801 = vmatpush1.msra.mxu0 0.0
      %802 = vmatprep.subr.mxu0 0.0
      %803 = vmatpush1.msra.mxu0 0.0
      %804 = vmatprep.subr.mxu0 0.0
      %805 = vmatpush1.msra.mxu0 0.0
      %806 = vmatprep.mubr.f32.mxu0 0.0
      %807 = vmatmul.mubr.f32.gmra.mrb[0].mxu0 %v740
      %v808 = vpop.f32.mrb[0].mxu0
      %v809 = vadd.f32 0.0, %v808
      %v810 = vpop.f32.mrb[0].mxu0
      %811 = vdwg.mxu0
      %v813 = vsel %vm738, %v709, 0
      %815 = vmatprep.subr.mxu0 0.0
      %816 = vmatpush1.msra.mxu0 %v723
      %817 = vmatprep.subr.mxu0 0.0
      %818 = vmatpush1.msra.mxu0 0.0
      %819 = vmatprep.subr.mxu0 0.0
      %820 = vmatpush1.msra.mxu0 0.0
      %821 = vmatprep.subr.mxu0 0.0
      %822 = vmatpush1.msra.mxu0 0.0
      %823 = vmatprep.subr.mxu0 0.0
      %824 = vmatpush1.msra.mxu0 0.0
      %825 = vmatprep.subr.mxu0 0.0
      %826 = vmatpush1.msra.mxu0 0.0
      %827 = vmatprep.subr.mxu0 0.0
      %828 = vmatpush1.msra.mxu0 0.0
      %829 = vmatprep.subr.mxu0 0.0
      %830 = vmatpush1.msra.mxu0 0.0
      %831 = vmatprep.subr.mxu0 0.0
      %832 = vmatpush1.msra.mxu0 0.0
      %833 = vmatprep.subr.mxu0 0.0
      %834 = vmatpush1.msra.mxu0 0.0
      %835 = vmatprep.subr.mxu0 0.0
      %836 = vmatpush1.msra.mxu0 0.0
      %837 = vmatprep.subr.mxu0 0.0
      %838 = vmatpush1.msra.mxu0 0.0
      %839 = vmatprep.subr.mxu0 0.0
      %840 = vmatpush1.msra.mxu0 0.0
      %841 = vmatprep.subr.mxu0 0.0
      %842 = vmatpush1.msra.mxu0 0.0
      %843 = vmatprep.subr.mxu0 0.0
      %844 = vmatpush1.msra.mxu0 0.0
      %845 = vmatprep.subr.mxu0 0.0
      %846 = vmatpush1.msra.mxu0 0.0
      %847 = vmatprep.subr.mxu0 0.0
      %848 = vmatpush1.msra.mxu0 0.0
      %849 = vmatprep.subr.mxu0 0.0
      %850 = vmatpush1.msra.mxu0 0.0
      %851 = vmatprep.subr.mxu0 0.0
      %852 = vmatpush1.msra.mxu0 0.0
      %853 = vmatprep.subr.mxu0 0.0
      %854 = vmatpush1.msra.mxu0 0.0
      %855 = vmatprep.subr.mxu0 0.0
      %856 = vmatpush1.msra.mxu0 0.0
      %857 = vmatprep.subr.mxu0 0.0
      %858 = vmatpush1.msra.mxu0 0.0
      %859 = vmatprep.subr.mxu0 0.0
      %860 = vmatpush1.msra.mxu0 0.0
      %861 = vmatprep.subr.mxu0 0.0
      %862 = vmatpush1.msra.mxu0 0.0
      %863 = vmatprep.subr.mxu0 0.0
      %864 = vmatpush1.msra.mxu0 0.0
      %865 = vmatprep.subr.mxu0 0.0
      %866 = vmatpush1.msra.mxu0 0.0
      %867 = vmatprep.subr.mxu0 0.0
      %868 = vmatpush1.msra.mxu0 0.0
      %869 = vmatprep.subr.mxu0 0.0
      %870 = vmatpush1.msra.mxu0 0.0
      %871 = vmatprep.subr.mxu0 0.0
      %872 = vmatpush1.msra.mxu0 0.0
      %873 = vmatprep.subr.mxu0 0.0
      %874 = vmatpush1.msra.mxu0 0.0
      %875 = vmatprep.subr.mxu0 0.0
      %876 = vmatpush1.msra.mxu0 0.0
      %877 = vmatprep.subr.mxu0 0.0
      %878 = vmatpush1.msra.mxu0 0.0
      %879 = vmatprep.mubr.f32.mxu0 0.0
      %880 = vmatmul.mubr.f32.gmra.mrb[0].mxu0 %v813
      %v881 = vpop.f32.mrb[0].mxu0
      %v882 = vadd.f32 0.0, %v881
      %v883 = vpop.f32.mrb[0].mxu0
      %884 = vdwg.mxu0
      %v885 = vld [vmem:[%s5] sm:$0xff]
      %v886 = vld [vmem:[%s5 + $0x8] sm:$0xff]
      %v887 = vld [vmem:[%s5 + $0x10] sm:$0xff]
      %v888 = vld [vmem:[%s5 + $0x18] sm:$0xff]
      %v889 = vld [vmem:[%s4] sm:$0xff]
      %v890 = vld [vmem:[%s4 + $0x8] sm:$0xff]
      %v891 = vld [vmem:[%s4 + $0x10] sm:$0xff]
      %v892 = vld [vmem:[%s4 + $0x18] sm:$0xff]
      %894 = vset.pattern.permute.xlu0 0
      %895 = vperm.xlu0 %894, %v889
      %v896 = vpop.permute.xlu0 %895
      %899 = vset.pattern.permute.xlu0 0
      %900 = vperm.xlu0 %899, %v890
      %v901 = vpop.permute.xlu0 %900
      %904 = vset.pattern.permute.xlu0 0
      %905 = vperm.xlu0 %904, %v891
      %v906 = vpop.permute.xlu0 %905
      %909 = vset.pattern.permute.xlu0 0
      %910 = vperm.xlu0 %909, %v892
      %v911 = vpop.permute.xlu0 %910
      %v913 = vlaneseq
      %v914 = vshrl.u32 %v913, 7
      %v915 = vsub.s32 0, %v914
      %v916 = vrot.slane %v882, %v915
      %v917 = vmul.f32 %v896, %v916
      %v918 = vmul.f32 %v901, %v916
      %v919 = vmul.f32 %v906, %v916
      %v920 = vmul.f32 %v911, %v916
      %v922 = vsel %vm738, %v885, 0
      %v925 = vsel %vm738, %v886, 0
      %v928 = vsel %vm738, %v887, 0
      %v931 = vsel %vm738, %v888, 0
      %933 = vmatprep.subr.mxu0 0.0
      %934 = vmatpush1.msra.mxu0 %v809
      %935 = vmatprep.subr.mxu0 0.0
      %936 = vmatpush1.msra.mxu0 0.0
      %937 = vmatprep.subr.mxu0 0.0
      %938 = vmatpush1.msra.mxu0 0.0
      %939 = vmatprep.subr.mxu0 0.0
      %940 = vmatpush1.msra.mxu0 0.0
      %941 = vmatprep.subr.mxu0 0.0
      %942 = vmatpush1.msra.mxu0 0.0
      %943 = vmatprep.subr.mxu0 0.0
      %944 = vmatpush1.msra.mxu0 0.0
      %945 = vmatprep.subr.mxu0 0.0
      %946 = vmatpush1.msra.mxu0 0.0
      %947 = vmatprep.subr.mxu0 0.0
      %948 = vmatpush1.msra.mxu0 0.0
      %949 = vmatprep.subr.mxu0 0.0
      %950 = vmatpush1.msra.mxu0 0.0
      %951 = vmatprep.subr.mxu0 0.0
      %952 = vmatpush1.msra.mxu0 0.0
      %953 = vmatprep.subr.mxu0 0.0
      %954 = vmatpush1.msra.mxu0 0.0
      %955 = vmatprep.subr.mxu0 0.0
      %956 = vmatpush1.msra.mxu0 0.0
      %957 = vmatprep.subr.mxu0 0.0
      %958 = vmatpush1.msra.mxu0 0.0
      %959 = vmatprep.subr.mxu0 0.0
      %960 = vmatpush1.msra.mxu0 0.0
      %961 = vmatprep.subr.mxu0 0.0
      %962 = vmatpush1.msra.mxu0 0.0
      %963 = vmatprep.subr.mxu0 0.0
      %964 = vmatpush1.msra.mxu0 0.0
      %965 = vmatprep.subr.mxu0 0.0
      %966 = vmatpush1.msra.mxu0 0.0
      %967 = vmatprep.subr.mxu0 0.0
      %968 = vmatpush1.msra.mxu0 0.0
      %969 = vmatprep.subr.mxu0 0.0
      %970 = vmatpush1.msra.mxu0 0.0
      %971 = vmatprep.subr.mxu0 0.0
      %972 = vmatpush1.msra.mxu0 0.0
      %973 = vmatprep.subr.mxu0 0.0
      %974 = vmatpush1.msra.mxu0 0.0
      %975 = vmatprep.subr.mxu0 0.0
      %976 = vmatpush1.msra.mxu0 0.0
      %977 = vmatprep.subr.mxu0 0.0
      %978 = vmatpush1.msra.mxu0 0.0
      %979 = vmatprep.subr.mxu0 0.0
      %980 = vmatpush1.msra.mxu0 0.0
      %981 = vmatprep.subr.mxu0 0.0
      %982 = vmatpush1.msra.mxu0 0.0
      %983 = vmatprep.subr.mxu0 0.0
      %984 = vmatpush1.msra.mxu0 0.0
      %985 = vmatprep.subr.mxu0 0.0
      %986 = vmatpush1.msra.mxu0 0.0
      %987 = vmatprep.subr.mxu0 0.0
      %988 = vmatpush1.msra.mxu0 0.0
      %989 = vmatprep.subr.mxu0 0.0
      %990 = vmatpush1.msra.mxu0 0.0
      %991 = vmatprep.subr.mxu0 0.0
      %992 = vmatpush1.msra.mxu0 0.0
      %993 = vmatprep.subr.mxu0 0.0
      %994 = vmatpush1.msra.mxu0 0.0
      %995 = vmatprep.subr.mxu0 0.0
      %996 = vmatpush1.msra.mxu0 0.0
      %997 = vmatprep.mubr.f32.mxu0 0.0
      %998 = vmatmul.mubr.f32.gmra.mrb[0].mxu0 %v922
      %v999 = vpop.f32.mrb[0].mxu0
      %v1000 = vadd.f32 %v917, %v999
      %v1001 = vpop.f32.mrb[0].mxu0
      %1002 = vmatprep.mubr.f32.mxu0 0.0
      %1003 = vmatmul.mubr.f32.gmra.mrb[0].mxu0 %v925
      %v1004 = vpop.f32.mrb[0].mxu0
      %v1005 = vadd.f32 %v918, %v1004
      %v1006 = vpop.f32.mrb[0].mxu0
      %1007 = vmatprep.mubr.f32.mxu0 0.0
      %1008 = vmatmul.mubr.f32.gmra.mrb[0].mxu0 %v928
      %v1009 = vpop.f32.mrb[0].mxu0
      %v1010 = vadd.f32 %v919, %v1009
      %v1011 = vpop.f32.mrb[0].mxu0
      %1012 = vmatprep.mubr.f32.mxu0 0.0
      %1013 = vmatmul.mubr.f32.gmra.mrb[0].mxu0 %v931
      %v1014 = vpop.f32.mrb[0].mxu0
      %v1015 = vadd.f32 %v920, %v1014
      %v1016 = vpop.f32.mrb[0].mxu0
      %1017 = vdwg.mxu0
      %v1018 = vld [vmem:[%s6] sm:$0xff]
      %v1019 = vld [vmem:[%s6 + $0x8] sm:$0xff]
      %v1020 = vld [vmem:[%s6 + $0x10] sm:$0xff]
      %v1021 = vld [vmem:[%s6 + $0x18] sm:$0xff]
      %1023 = vset.pattern.permute.xlu0 0
      %1024 = vperm.xlu0 %1023, %v1018
      %v1025 = vpop.permute.xlu0 %1024
      %1028 = vset.pattern.permute.xlu0 0
      %1029 = vperm.xlu0 %1028, %v1019
      %v1030 = vpop.permute.xlu0 %1029
      %1033 = vset.pattern.permute.xlu0 0
      %1034 = vperm.xlu0 %1033, %v1020
      %v1035 = vpop.permute.xlu0 %1034
      %1038 = vset.pattern.permute.xlu0 0
      %1039 = vperm.xlu0 %1038, %v1021
      %v1040 = vpop.permute.xlu0 %1039
      %v1042 = vadd.f32 %v1000, %v1025
      %v1043 = vadd.f32 %v1005, %v1030
      %v1044 = vadd.f32 %v1010, %v1035
      %v1045 = vadd.f32 %v1015, %v1040
      %v1046 = vmax.f32 %v1042, 0.0
      %v1047 = vmax.f32 %v1043, 0.0
      %v1048 = vmax.f32 %v1044, 0.0
      %v1049 = vmax.f32 %v1045, 0.0
      %v1050 = vld [vmem:[%s7] sm:$0xff]
      %v1051 = vld [vmem:[%s7 + $0x8] sm:$0xff]
      %v1052 = vld [vmem:[%s7 + $0x10] sm:$0xff]
      %v1053 = vld [vmem:[%s7 + $0x18] sm:$0xff]
      %v1054 = vld [vmem:[%s8] sm:$0xff]
      %v1055 = vld [vmem:[%s8 + $0x8] sm:$0xff]
      %v1056 = vld [vmem:[%s8 + $0x10] sm:$0xff]
      %v1057 = vld [vmem:[%s8 + $0x18] sm:$0xff]
      %1059 = vset.pattern.permute.xlu0 0
      %1060 = vperm.xlu0 %1059, %v1054
      %v1061 = vpop.permute.xlu0 %1060
      %1064 = vset.pattern.permute.xlu0 0
      %1065 = vperm.xlu0 %1064, %v1055
      %v1066 = vpop.permute.xlu0 %1065
      %1069 = vset.pattern.permute.xlu0 0
      %1070 = vperm.xlu0 %1069, %v1056
      %v1071 = vpop.permute.xlu0 %1070
      %1074 = vset.pattern.permute.xlu0 0
      %1075 = vperm.xlu0 %1074, %v1057
      %v1076 = vpop.permute.xlu0 %1075
      %vm1078 = vcmask 261120
      %v1080 = vsel %vm1078, %v1050, 0
      %v1083 = vsel %vm1078, %v1051, 0
      %v1086 = vsel %vm1078, %v1052, 0
      %v1089 = vsel %vm1078, %v1053, 0
      %1091 = vmatprep.subr.mxu0 0.0
      %1092 = vmatpush1.msra.mxu0 %v1046
      %1093 = vmatprep.subr.mxu0 0.0
      %1094 = vmatpush1.msra.mxu0 %v1047
      %1095 = vmatprep.subr.mxu0 0.0
      %1096 = vmatpush1.msra.mxu0 %v1048
      %1097 = vmatprep.subr.mxu0 0.0
      %1098 = vmatpush1.msra.mxu0 %v1049
      %1099 = vmatprep.subr.mxu0 0.0
      %1100 = vmatpush1.msra.mxu0 0.0
      %1101 = vmatprep.subr.mxu0 0.0
      %1102 = vmatpush1.msra.mxu0 0.0
      %1103 = vmatprep.subr.mxu0 0.0
      %1104 = vmatpush1.msra.mxu0 0.0
      %1105 = vmatprep.subr.mxu0 0.0
      %1106 = vmatpush1.msra.mxu0 0.0
      %1107 = vmatprep.subr.mxu0 0.0
      %1108 = vmatpush1.msra.mxu0 0.0
      %1109 = vmatprep.subr.mxu0 0.0
      %1110 = vmatpush1.msra.mxu0 0.0
      %1111 = vmatprep.subr.mxu0 0.0
      %1112 = vmatpush1.msra.mxu0 0.0
      %1113 = vmatprep.subr.mxu0 0.0
      %1114 = vmatpush1.msra.mxu0 0.0
      %1115 = vmatprep.subr.mxu0 0.0
      %1116 = vmatpush1.msra.mxu0 0.0
      %1117 = vmatprep.subr.mxu0 0.0
      %1118 = vmatpush1.msra.mxu0 0.0
      %1119 = vmatprep.subr.mxu0 0.0
      %1120 = vmatpush1.msra.mxu0 0.0
      %1121 = vmatprep.subr.mxu0 0.0
      %1122 = vmatpush1.msra.mxu0 0.0
      %1123 = vmatprep.subr.mxu0 0.0
      %1124 = vmatpush1.msra.mxu0 0.0
      %1125 = vmatprep.subr.mxu0 0.0
      %1126 = vmatpush1.msra.mxu0 0.0
      %1127 = vmatprep.subr.mxu0 0.0
      %1128 = vmatpush1.msra.mxu0 0.0
      %1129 = vmatprep.subr.mxu0 0.0
      %1130 = vmatpush1.msra.mxu0 0.0
      %1131 = vmatprep.subr.mxu0 0.0
      %1132 = vmatpush1.msra.mxu0 0.0
      %1133 = vmatprep.subr.mxu0 0.0
      %1134 = vmatpush1.msra.mxu0 0.0
      %1135 = vmatprep.subr.mxu0 0.0
      %1136 = vmatpush1.msra.mxu0 0.0
      %1137 = vmatprep.subr.mxu0 0.0
      %1138 = vmatpush1.msra.mxu0 0.0
      %1139 = vmatprep.subr.mxu0 0.0
      %1140 = vmatpush1.msra.mxu0 0.0
      %1141 = vmatprep.subr.mxu0 0.0
      %1142 = vmatpush1.msra.mxu0 0.0
      %1143 = vmatprep.subr.mxu0 0.0
      %1144 = vmatpush1.msra.mxu0 0.0
      %1145 = vmatprep.subr.mxu0 0.0
      %1146 = vmatpush1.msra.mxu0 0.0
      %1147 = vmatprep.subr.mxu0 0.0
      %1148 = vmatpush1.msra.mxu0 0.0
      %1149 = vmatprep.subr.mxu0 0.0
      %1150 = vmatpush1.msra.mxu0 0.0
      %1151 = vmatprep.subr.mxu0 0.0
      %1152 = vmatpush1.msra.mxu0 0.0
      %1153 = vmatprep.subr.mxu0 0.0
      %1154 = vmatpush1.msra.mxu0 0.0
      %1155 = vmatprep.mubr.f32.mxu0 0.0
      %1156 = vmatmul.mubr.f32.gmra.mrb[0].mxu0 %v1080
      %v1157 = vpop.f32.mrb[0].mxu0
      %v1158 = vadd.f32 %v1061, %v1157
      %v1159 = vpop.f32.mrb[0].mxu0
      %1160 = vmatprep.mubr.f32.mxu0 0.0
      %1161 = vmatmul.mubr.f32.gmra.mrb[0].mxu0 %v1083
      %v1162 = vpop.f32.mrb[0].mxu0
      %v1163 = vadd.f32 %v1066, %v1162
      %v1164 = vpop.f32.mrb[0].mxu0
      %1165 = vmatprep.mubr.f32.mxu0 0.0
      %1166 = vmatmul.mubr.f32.gmra.mrb[0].mxu0 %v1086
      %v1167 = vpop.f32.mrb[0].mxu0
      %v1168 = vadd.f32 %v1071, %v1167
      %v1169 = vpop.f32.mrb[0].mxu0
      %1170 = vmatprep.mubr.f32.mxu0 0.0
      %1171 = vmatmul.mubr.f32.gmra.mrb[0].mxu0 %v1089
      %v1172 = vpop.f32.mrb[0].mxu0
      %v1173 = vadd.f32 %v1076, %v1172
      %v1174 = vpop.f32.mrb[0].mxu0
      %1175 = vdwg.mxu0
      %v1176 = vmax.f32 %v1158, 0.0
      %v1177 = vmax.f32 %v1163, 0.0
      %v1178 = vmax.f32 %v1168, 0.0
      %v1179 = vmax.f32 %v1173, 0.0
      %v1180 = vld [vmem:[%s9] sm:$0x1]
      %v1181 = vld [vmem:[#allocation3] sm:$0x1]
      %1183 = vset.pattern.permute.xlu0 0
      %1184 = vperm.xlu0 %1183, %v1181
      %v1185 = vpop.permute.xlu0 %1184
      %v1187 = vlaneseq
      %v1188 = vshrl.u32 %v1187, 7
      %v1189 = vsub.s32 0, %v1188
      %v1190 = vrot.slane %v1185, %v1189
      %v1192 = vsel %vm1078, %v1180, 0
      %1194 = vmatprep.subr.mxu0 0.0
      %1195 = vmatpush1.msra.mxu0 %v1176
      %1196 = vmatprep.subr.mxu0 0.0
      %1197 = vmatpush1.msra.mxu0 %v1177
      %1198 = vmatprep.subr.mxu0 0.0
      %1199 = vmatpush1.msra.mxu0 %v1178
      %1200 = vmatprep.subr.mxu0 0.0
      %1201 = vmatpush1.msra.mxu0 %v1179
      %1202 = vmatprep.subr.mxu0 0.0
      %1203 = vmatpush1.msra.mxu0 0.0
      %1204 = vmatprep.subr.mxu0 0.0
      %1205 = vmatpush1.msra.mxu0 0.0
      %1206 = vmatprep.subr.mxu0 0.0
      %1207 = vmatpush1.msra.mxu0 0.0
      %1208 = vmatprep.subr.mxu0 0.0
      %1209 = vmatpush1.msra.mxu0 0.0
      %1210 = vmatprep.subr.mxu0 0.0
      %1211 = vmatpush1.msra.mxu0 0.0
      %1212 = vmatprep.subr.mxu0 0.0
      %1213 = vmatpush1.msra.mxu0 0.0
      %1214 = vmatprep.subr.mxu0 0.0
      %1215 = vmatpush1.msra.mxu0 0.0
      %1216 = vmatprep.subr.mxu0 0.0
      %1217 = vmatpush1.msra.mxu0 0.0
      %1218 = vmatprep.subr.mxu0 0.0
      %1219 = vmatpush1.msra.mxu0 0.0
      %1220 = vmatprep.subr.mxu0 0.0
      %1221 = vmatpush1.msra.mxu0 0.0
      %1222 = vmatprep.subr.mxu0 0.0
      %1223 = vmatpush1.msra.mxu0 0.0
      %1224 = vmatprep.subr.mxu0 0.0
      %1225 = vmatpush1.msra.mxu0 0.0
      %1226 = vmatprep.subr.mxu0 0.0
      %1227 = vmatpush1.msra.mxu0 0.0
      %1228 = vmatprep.subr.mxu0 0.0
      %1229 = vmatpush1.msra.mxu0 0.0
      %1230 = vmatprep.subr.mxu0 0.0
      %1231 = vmatpush1.msra.mxu0 0.0
      %1232 = vmatprep.subr.mxu0 0.0
      %1233 = vmatpush1.msra.mxu0 0.0
      %1234 = vmatprep.subr.mxu0 0.0
      %1235 = vmatpush1.msra.mxu0 0.0
      %1236 = vmatprep.subr.mxu0 0.0
      %1237 = vmatpush1.msra.mxu0 0.0
      %1238 = vmatprep.subr.mxu0 0.0
      %1239 = vmatpush1.msra.mxu0 0.0
      %1240 = vmatprep.subr.mxu0 0.0
      %1241 = vmatpush1.msra.mxu0 0.0
      %1242 = vmatprep.subr.mxu0 0.0
      %1243 = vmatpush1.msra.mxu0 0.0
      %1244 = vmatprep.subr.mxu0 0.0
      %1245 = vmatpush1.msra.mxu0 0.0
      %1246 = vmatprep.subr.mxu0 0.0
      %1247 = vmatpush1.msra.mxu0 0.0
      %1248 = vmatprep.subr.mxu0 0.0
      %1249 = vmatpush1.msra.mxu0 0.0
      %1250 = vmatprep.subr.mxu0 0.0
      %1251 = vmatpush1.msra.mxu0 0.0
      %1252 = vmatprep.subr.mxu0 0.0
      %1253 = vmatpush1.msra.mxu0 0.0
      %1254 = vmatprep.subr.mxu0 0.0
      %1255 = vmatpush1.msra.mxu0 0.0
      %1256 = vmatprep.subr.mxu0 0.0
      %1257 = vmatpush1.msra.mxu0 0.0
      %1258 = vmatprep.mubr.f32.mxu0 0.0
      %1259 = vmatmul.mubr.f32.gmra.mrb[0].mxu0 %v1192
      %v1260 = vpop.f32.mrb[0].mxu0
      %v1261 = vadd.f32 %v1190, %v1260
      %v1262 = vpop.f32.mrb[0].mxu0
      %1263 = vdwg.mxu0
      %v1264 = vxor.u32 %v1261, 2147483648
      %v1265 = vmul.f32 %v1264, 1.442695
      %v1266 = vpow.pop %v1265
      %v1267 = vadd.f32 %v1266, 1.0
      %v1268 = vrcp.pop %v1267
      %v1269 = vmul.f32 1.0, %v1268
      %v1270 = vmul.f32 %v1269, %v711
      %vm1271 = vcmask 130048
      %v1273 = vsel %vm1271, %v1270, 0
      %1275 = vmatprep.subr.mxu0 0.0
      %1276 = vmatpush1.msra.mxu0 %v736
      %1277 = vmatprep.subr.mxu0 0.0
      %1278 = vmatpush1.msra.mxu0 %v737
      %1279 = vmatprep.subr.mxu0 0.0
      %1280 = vmatpush1.msra.mxu0 0.0
      %1281 = vmatprep.subr.mxu0 0.0
      %1282 = vmatpush1.msra.mxu0 0.0
      %1283 = vmatprep.subr.mxu0 0.0
      %1284 = vmatpush1.msra.mxu0 0.0
      %1285 = vmatprep.subr.mxu0 0.0
      %1286 = vmatpush1.msra.mxu0 0.0
      %1287 = vmatprep.subr.mxu0 0.0
      %1288 = vmatpush1.msra.mxu0 0.0
      %1289 = vmatprep.subr.mxu0 0.0
      %1290 = vmatpush1.msra.mxu0 0.0
      %1291 = vmatprep.subr.mxu0 0.0
      %1292 = vmatpush1.msra.mxu0 0.0
      %1293 = vmatprep.subr.mxu0 0.0
      %1294 = vmatpush1.msra.mxu0 0.0
      %1295 = vmatprep.subr.mxu0 0.0
      %1296 = vmatpush1.msra.mxu0 0.0
      %1297 = vmatprep.subr.mxu0 0.0
      %1298 = vmatpush1.msra.mxu0 0.0
      %1299 = vmatprep.subr.mxu0 0.0
      %1300 = vmatpush1.msra.mxu0 0.0
      %1301 = vmatprep.subr.mxu0 0.0
      %1302 = vmatpush1.msra.mxu0 0.0
      %1303 = vmatprep.subr.mxu0 0.0
      %1304 = vmatpush1.msra.mxu0 0.0
      %1305 = vmatprep.subr.mxu0 0.0
      %1306 = vmatpush1.msra.mxu0 0.0
      %1307 = vmatprep.subr.mxu0 0.0
      %1308 = vmatpush1.msra.mxu0 0.0
      %1309 = vmatprep.subr.mxu0 0.0
      %1310 = vmatpush1.msra.mxu0 0.0
      %1311 = vmatprep.subr.mxu0 0.0
      %1312 = vmatpush1.msra.mxu0 0.0
      %1313 = vmatprep.subr.mxu0 0.0
      %1314 = vmatpush1.msra.mxu0 0.0
      %1315 = vmatprep.subr.mxu0 0.0
      %1316 = vmatpush1.msra.mxu0 0.0
      %1317 = vmatprep.subr.mxu0 0.0
      %1318 = vmatpush1.msra.mxu0 0.0
      %1319 = vmatprep.subr.mxu0 0.0
      %1320 = vmatpush1.msra.mxu0 0.0
      %1321 = vmatprep.subr.mxu0 0.0
      %1322 = vmatpush1.msra.mxu0 0.0
      %1323 = vmatprep.subr.mxu0 0.0
      %1324 = vmatpush1.msra.mxu0 0.0
      %1325 = vmatprep.subr.mxu0 0.0
      %1326 = vmatpush1.msra.mxu0 0.0
      %1327 = vmatprep.subr.mxu0 0.0
      %1328 = vmatpush1.msra.mxu0 0.0
      %1329 = vmatprep.subr.mxu0 0.0
      %1330 = vmatpush1.msra.mxu0 0.0
      %1331 = vmatprep.subr.mxu0 0.0
      %1332 = vmatpush1.msra.mxu0 0.0
      %1333 = vmatprep.subr.mxu0 0.0
      %1334 = vmatpush1.msra.mxu0 0.0
      %1335 = vmatprep.subr.mxu0 0.0
      %1336 = vmatpush1.msra.mxu0 0.0
      %1337 = vmatprep.subr.mxu0 0.0
      %1338 = vmatpush1.msra.mxu0 0.0
      %1339 = vmatprep.mubr.f32.mxu0 0.0
      %1340 = vmatmul.mubr.f32.gmra.mrb[0].mxu0 %v1273
      %v1341 = vpop.f32.mrb[0].mxu0
      %v1342 = vadd.f32 0.0, %v1341
      %v1343 = vpop.f32.mrb[0].mxu0
      %1344 = vdwg.mxu0
      %v1345 = vld [vmem:[%s12] sm:$0xff]
      %v1346 = vld [vmem:[%s12 + $0x8] sm:$0xff]
      %v1347 = vld [vmem:[%s12 + $0x10] sm:$0xff]
      %v1348 = vld [vmem:[%s12 + $0x18] sm:$0xff]
      %v1349 = vld [vmem:[%s11] sm:$0xff]
      %v1350 = vld [vmem:[%s11 + $0x8] sm:$0xff]
      %v1351 = vld [vmem:[%s11 + $0x10] sm:$0xff]
      %v1352 = vld [vmem:[%s11 + $0x18] sm:$0xff]
      %1354 = vset.pattern.permute.xlu0 0
      %1355 = vperm.xlu0 %1354, %v1349
      %v1356 = vpop.permute.xlu0 %1355
      %1359 = vset.pattern.permute.xlu0 0
      %1360 = vperm.xlu0 %1359, %v1350
      %v1361 = vpop.permute.xlu0 %1360
      %1364 = vset.pattern.permute.xlu0 0
      %1365 = vperm.xlu0 %1364, %v1351
      %v1366 = vpop.permute.xlu0 %1365
      %1369 = vset.pattern.permute.xlu0 0
      %1370 = vperm.xlu0 %1369, %v1352
      %v1371 = vpop.permute.xlu0 %1370
      %v1373 = vlaneseq
      %v1374 = vshrl.u32 %v1373, 7
      %v1375 = vsub.s32 0, %v1374
      %v1376 = vrot.slane %v710, %v1375
      %v1377 = vmul.f32 %v1356, %v1376
      %v1378 = vmul.f32 %v1361, %v1376
      %v1379 = vmul.f32 %v1366, %v1376
      %v1380 = vmul.f32 %v1371, %v1376
      %v1382 = vsel %vm738, %v1345, 0
      %v1385 = vsel %vm738, %v1346, 0
      %v1388 = vsel %vm738, %v1347, 0
      %v1391 = vsel %vm738, %v1348, 0
      %1393 = vmatprep.subr.mxu0 0.0
      %1394 = vmatpush1.msra.mxu0 %v708
      %1395 = vmatprep.subr.mxu0 0.0
      %1396 = vmatpush1.msra.mxu0 0.0
      %1397 = vmatprep.subr.mxu0 0.0
      %1398 = vmatpush1.msra.mxu0 0.0
      %1399 = vmatprep.subr.mxu0 0.0
      %1400 = vmatpush1.msra.mxu0 0.0
      %1401 = vmatprep.subr.mxu0 0.0
      %1402 = vmatpush1.msra.mxu0 0.0
      %1403 = vmatprep.subr.mxu0 0.0
      %1404 = vmatpush1.msra.mxu0 0.0
      %1405 = vmatprep.subr.mxu0 0.0
      %1406 = vmatpush1.msra.mxu0 0.0
      %1407 = vmatprep.subr.mxu0 0.0
      %1408 = vmatpush1.msra.mxu0 0.0
      %1409 = vmatprep.subr.mxu0 0.0
      %1410 = vmatpush1.msra.mxu0 0.0
      %1411 = vmatprep.subr.mxu0 0.0
      %1412 = vmatpush1.msra.mxu0 0.0
      %1413 = vmatprep.subr.mxu0 0.0
      %1414 = vmatpush1.msra.mxu0 0.0
      %1415 = vmatprep.subr.mxu0 0.0
      %1416 = vmatpush1.msra.mxu0 0.0
      %1417 = vmatprep.subr.mxu0 0.0
      %1418 = vmatpush1.msra.mxu0 0.0
      %1419 = vmatprep.subr.mxu0 0.0
      %1420 = vmatpush1.msra.mxu0 0.0
      %1421 = vmatprep.subr.mxu0 0.0
      %1422 = vmatpush1.msra.mxu0 0.0
      %1423 = vmatprep.subr.mxu0 0.0
      %1424 = vmatpush1.msra.mxu0 0.0
      %1425 = vmatprep.subr.mxu0 0.0
      %1426 = vmatpush1.msra.mxu0 0.0
      %1427 = vmatprep.subr.mxu0 0.0
      %1428 = vmatpush1.msra.mxu0 0.0
      %1429 = vmatprep.subr.mxu0 0.0
      %1430 = vmatpush1.msra.mxu0 0.0
      %1431 = vmatprep.subr.mxu0 0.0
      %1432 = vmatpush1.msra.mxu0 0.0
      %1433 = vmatprep.subr.mxu0 0.0
      %1434 = vmatpush1.msra.mxu0 0.0
      %1435 = vmatprep.subr.mxu0 0.0
      %1436 = vmatpush1.msra.mxu0 0.0
      %1437 = vmatprep.subr.mxu0 0.0
      %1438 = vmatpush1.msra.mxu0 0.0
      %1439 = vmatprep.subr.mxu0 0.0
      %1440 = vmatpush1.msra.mxu0 0.0
      %1441 = vmatprep.subr.mxu0 0.0
      %1442 = vmatpush1.msra.mxu0 0.0
      %1443 = vmatprep.subr.mxu0 0.0
      %1444 = vmatpush1.msra.mxu0 0.0
      %1445 = vmatprep.subr.mxu0 0.0
      %1446 = vmatpush1.msra.mxu0 0.0
      %1447 = vmatprep.subr.mxu0 0.0
      %1448 = vmatpush1.msra.mxu0 0.0
      %1449 = vmatprep.subr.mxu0 0.0
      %1450 = vmatpush1.msra.mxu0 0.0
      %1451 = vmatprep.subr.mxu0 0.0
      %1452 = vmatpush1.msra.mxu0 0.0
      %1453 = vmatprep.subr.mxu0 0.0
      %1454 = vmatpush1.msra.mxu0 0.0
      %1455 = vmatprep.subr.mxu0 0.0
      %1456 = vmatpush1.msra.mxu0 0.0
      %1457 = vmatprep.mubr.f32.mxu0 0.0
      %1458 = vmatmul.mubr.f32.gmra.mrb[0].mxu0 %v1382
      %v1459 = vpop.f32.mrb[0].mxu0
      %v1460 = vadd.f32 %v1377, %v1459
      %v1461 = vpop.f32.mrb[0].mxu0
      %1462 = vmatprep.mubr.f32.mxu0 0.0
      %1463 = vmatmul.mubr.f32.gmra.mrb[0].mxu0 %v1385
      %v1464 = vpop.f32.mrb[0].mxu0
      %v1465 = vadd.f32 %v1378, %v1464
      %v1466 = vpop.f32.mrb[0].mxu0
      %1467 = vmatprep.mubr.f32.mxu0 0.0
      %1468 = vmatmul.mubr.f32.gmra.mrb[0].mxu0 %v1388
      %v1469 = vpop.f32.mrb[0].mxu0
      %v1470 = vadd.f32 %v1379, %v1469
      %v1471 = vpop.f32.mrb[0].mxu0
      %1472 = vmatprep.mubr.f32.mxu0 0.0
      %1473 = vmatmul.mubr.f32.gmra.mrb[0].mxu0 %v1391
      %v1474 = vpop.f32.mrb[0].mxu0
      %v1475 = vadd.f32 %v1380, %v1474
      %v1476 = vpop.f32.mrb[0].mxu0
      %1477 = vdwg.mxu0
      %v1478 = vld [vmem:[%s13] sm:$0xff]
      %v1479 = vld [vmem:[%s13 + $0x8] sm:$0xff]
      %v1480 = vld [vmem:[%s13 + $0x10] sm:$0xff]
      %v1481 = vld [vmem:[%s13 + $0x18] sm:$0xff]
      %1483 = vset.pattern.permute.xlu0 0
      %1484 = vperm.xlu0 %1483, %v1478
      %v1485 = vpop.permute.xlu0 %1484
      %1488 = vset.pattern.permute.xlu0 0
      %1489 = vperm.xlu0 %1488, %v1479
      %v1490 = vpop.permute.xlu0 %1489
      %1493 = vset.pattern.permute.xlu0 0
      %1494 = vperm.xlu0 %1493, %v1480
      %v1495 = vpop.permute.xlu0 %1494
      %1498 = vset.pattern.permute.xlu0 0
      %1499 = vperm.xlu0 %1498, %v1481
      %v1500 = vpop.permute.xlu0 %1499
      %v1502 = vlaneseq
      %v1503 = vshrl.u32 %v1502, 7
      %v1504 = vsub.s32 0, %v1503
      %v1505 = vrot.slane %v1342, %v1504
      %v1506 = vmul.f32 %v1485, %v1505
      %v1507 = vmul.f32 %v1490, %v1505
      %v1508 = vmul.f32 %v1495, %v1505
      %v1509 = vmul.f32 %v1500, %v1505
      %v1510 = vadd.f32 %v1460, %v1506
      %v1511 = vadd.f32 %v1465, %v1507
      %v1512 = vadd.f32 %v1470, %v1508
      %v1513 = vadd.f32 %v1475, %v1509
      %v1514 = vld [vmem:[%s14] sm:$0xff]
      %v1515 = vld [vmem:[%s14 + $0x8] sm:$0xff]
      %v1516 = vld [vmem:[%s14 + $0x10] sm:$0xff]
      %v1517 = vld [vmem:[%s14 + $0x18] sm:$0xff]
      %1519 = vset.pattern.permute.xlu0 0
      %1520 = vperm.xlu0 %1519, %v1514
      %v1521 = vpop.permute.xlu0 %1520
      %1524 = vset.pattern.permute.xlu0 0
      %1525 = vperm.xlu0 %1524, %v1515
      %v1526 = vpop.permute.xlu0 %1525
      %1529 = vset.pattern.permute.xlu0 0
      %1530 = vperm.xlu0 %1529, %v1516
      %v1531 = vpop.permute.xlu0 %1530
      %1534 = vset.pattern.permute.xlu0 0
      %1535 = vperm.xlu0 %1534, %v1517
      %v1536 = vpop.permute.xlu0 %1535
      %v1538 = vadd.f32 %v1510, %v1521
      %v1539 = vadd.f32 %v1511, %v1526
      %v1540 = vadd.f32 %v1512, %v1531
      %v1541 = vadd.f32 %v1513, %v1536
      %v1542 = vmax.f32 %v1538, 0.0
      %v1543 = vmax.f32 %v1539, 0.0
      %v1544 = vmax.f32 %v1540, 0.0
      %v1545 = vmax.f32 %v1541, 0.0
      %v1546 = vld [vmem:[%s15] sm:$0xff]
      %v1547 = vld [vmem:[%s16] sm:$0xff]
      %1549 = vset.pattern.permute.xlu0 0
      %1550 = vperm.xlu0 %1549, %v1547
      %v1551 = vpop.permute.xlu0 %1550
      %v1554 = vsel %vm1078, %v1546, 0
      %1556 = vmatprep.subr.mxu0 0.0
      %1557 = vmatpush1.msra.mxu0 %v1542
      %1558 = vmatprep.subr.mxu0 0.0
      %1559 = vmatpush1.msra.mxu0 %v1543
      %1560 = vmatprep.subr.mxu0 0.0
      %1561 = vmatpush1.msra.mxu0 %v1544
      %1562 = vmatprep.subr.mxu0 0.0
      %1563 = vmatpush1.msra.mxu0 %v1545
      %1564 = vmatprep.subr.mxu0 0.0
      %1565 = vmatpush1.msra.mxu0 0.0
      %1566 = vmatprep.subr.mxu0 0.0
      %1567 = vmatpush1.msra.mxu0 0.0
      %1568 = vmatprep.subr.mxu0 0.0
      %1569 = vmatpush1.msra.mxu0 0.0
      %1570 = vmatprep.subr.mxu0 0.0
      %1571 = vmatpush1.msra.mxu0 0.0
      %1572 = vmatprep.subr.mxu0 0.0
      %1573 = vmatpush1.msra.mxu0 0.0
      %1574 = vmatprep.subr.mxu0 0.0
      %1575 = vmatpush1.msra.mxu0 0.0
      %1576 = vmatprep.subr.mxu0 0.0
      %1577 = vmatpush1.msra.mxu0 0.0
      %1578 = vmatprep.subr.mxu0 0.0
      %1579 = vmatpush1.msra.mxu0 0.0
      %1580 = vmatprep.subr.mxu0 0.0
      %1581 = vmatpush1.msra.mxu0 0.0
      %1582 = vmatprep.subr.mxu0 0.0
      %1583 = vmatpush1.msra.mxu0 0.0
      %1584 = vmatprep.subr.mxu0 0.0
      %1585 = vmatpush1.msra.mxu0 0.0
      %1586 = vmatprep.subr.mxu0 0.0
      %1587 = vmatpush1.msra.mxu0 0.0
      %1588 = vmatprep.subr.mxu0 0.0
      %1589 = vmatpush1.msra.mxu0 0.0
      %1590 = vmatprep.subr.mxu0 0.0
      %1591 = vmatpush1.msra.mxu0 0.0
      %1592 = vmatprep.subr.mxu0 0.0
      %1593 = vmatpush1.msra.mxu0 0.0
      %1594 = vmatprep.subr.mxu0 0.0
      %1595 = vmatpush1.msra.mxu0 0.0
      %1596 = vmatprep.subr.mxu0 0.0
      %1597 = vmatpush1.msra.mxu0 0.0
      %1598 = vmatprep.subr.mxu0 0.0
      %1599 = vmatpush1.msra.mxu0 0.0
      %1600 = vmatprep.subr.mxu0 0.0
      %1601 = vmatpush1.msra.mxu0 0.0
      %1602 = vmatprep.subr.mxu0 0.0
      %1603 = vmatpush1.msra.mxu0 0.0
      %1604 = vmatprep.subr.mxu0 0.0
      %1605 = vmatpush1.msra.mxu0 0.0
      %1606 = vmatprep.subr.mxu0 0.0
      %1607 = vmatpush1.msra.mxu0 0.0
      %1608 = vmatprep.subr.mxu0 0.0
      %1609 = vmatpush1.msra.mxu0 0.0
      %1610 = vmatprep.subr.mxu0 0.0
      %1611 = vmatpush1.msra.mxu0 0.0
      %1612 = vmatprep.subr.mxu0 0.0
      %1613 = vmatpush1.msra.mxu0 0.0
      %1614 = vmatprep.subr.mxu0 0.0
      %1615 = vmatpush1.msra.mxu0 0.0
      %1616 = vmatprep.subr.mxu0 0.0
      %1617 = vmatpush1.msra.mxu0 0.0
      %1618 = vmatprep.subr.mxu0 0.0
      %1619 = vmatpush1.msra.mxu0 0.0
      %1620 = vmatprep.mubr.f32.mxu0 0.0
      %1621 = vmatmul.mubr.f32.gmra.mrb[0].mxu0 %v1554
      %v1622 = vpop.f32.mrb[0].mxu0
      %v1623 = vadd.f32 %v1551, %v1622
      %v1624 = vpop.f32.mrb[0].mxu0
      %1625 = vdwg.mxu0
      %v1626 = vmax.f32 %v1623, 0.0
      %v1627 = vtanh.pop %v1626
      %1628 = vst.msk [vmem:[#allocation2] sm:$0xff] %vm738, %v1627
      %v1629 = vld [vmem:[%s17] sm:$0xff]
      %v1630 = vld [vmem:[%s17 + $0x8] sm:$0xff]
      %v1631 = vld [vmem:[%s18] sm:$0xff]
      %v1632 = vld [vmem:[%s18 + $0x8] sm:$0xff]
      %1634 = vset.pattern.permute.xlu0 0
      %1635 = vperm.xlu0 %1634, %v1631
      %v1636 = vpop.permute.xlu0 %1635
      %1639 = vset.pattern.permute.xlu0 0
      %1640 = vperm.xlu0 %1639, %v1632
      %v1641 = vpop.permute.xlu0 %1640
      %v1644 = vsel %vm738, %v1629, 0
      %v1647 = vsel %vm738, %v1630, 0
      %1649 = vmatprep.subr.mxu0 0.0
      %1650 = vmatpush1.msra.mxu0 %v1627
      %1651 = vmatprep.subr.mxu0 0.0
      %1652 = vmatpush1.msra.mxu0 0.0
      %1653 = vmatprep.subr.mxu0 0.0
      %1654 = vmatpush1.msra.mxu0 0.0
      %1655 = vmatprep.subr.mxu0 0.0
      %1656 = vmatpush1.msra.mxu0 0.0
      %1657 = vmatprep.subr.mxu0 0.0
      %1658 = vmatpush1.msra.mxu0 0.0
      %1659 = vmatprep.subr.mxu0 0.0
      %1660 = vmatpush1.msra.mxu0 0.0
      %1661 = vmatprep.subr.mxu0 0.0
      %1662 = vmatpush1.msra.mxu0 0.0
      %1663 = vmatprep.subr.mxu0 0.0
      %1664 = vmatpush1.msra.mxu0 0.0
      %1665 = vmatprep.subr.mxu0 0.0
      %1666 = vmatpush1.msra.mxu0 0.0
      %1667 = vmatprep.subr.mxu0 0.0
      %1668 = vmatpush1.msra.mxu0 0.0
      %1669 = vmatprep.subr.mxu0 0.0
      %1670 = vmatpush1.msra.mxu0 0.0
      %1671 = vmatprep.subr.mxu0 0.0
      %1672 = vmatpush1.msra.mxu0 0.0
      %1673 = vmatprep.subr.mxu0 0.0
      %1674 = vmatpush1.msra.mxu0 0.0
      %1675 = vmatprep.subr.mxu0 0.0
      %1676 = vmatpush1.msra.mxu0 0.0
      %1677 = vmatprep.subr.mxu0 0.0
      %1678 = vmatpush1.msra.mxu0 0.0
      %1679 = vmatprep.subr.mxu0 0.0
      %1680 = vmatpush1.msra.mxu0 0.0
      %1681 = vmatprep.subr.mxu0 0.0
      %1682 = vmatpush1.msra.mxu0 0.0
      %1683 = vmatprep.subr.mxu0 0.0
      %1684 = vmatpush1.msra.mxu0 0.0
      %1685 = vmatprep.subr.mxu0 0.0
      %1686 = vmatpush1.msra.mxu0 0.0
      %1687 = vmatprep.subr.mxu0 0.0
      %1688 = vmatpush1.msra.mxu0 0.0
      %1689 = vmatprep.subr.mxu0 0.0
      %1690 = vmatpush1.msra.mxu0 0.0
      %1691 = vmatprep.subr.mxu0 0.0
      %1692 = vmatpush1.msra.mxu0 0.0
      %1693 = vmatprep.subr.mxu0 0.0
      %1694 = vmatpush1.msra.mxu0 0.0
      %1695 = vmatprep.subr.mxu0 0.0
      %1696 = vmatpush1.msra.mxu0 0.0
      %1697 = vmatprep.subr.mxu0 0.0
      %1698 = vmatpush1.msra.mxu0 0.0
      %1699 = vmatprep.subr.mxu0 0.0
      %1700 = vmatpush1.msra.mxu0 0.0
      %1701 = vmatprep.subr.mxu0 0.0
      %1702 = vmatpush1.msra.mxu0 0.0
      %1703 = vmatprep.subr.mxu0 0.0
      %1704 = vmatpush1.msra.mxu0 0.0
      %1705 = vmatprep.subr.mxu0 0.0
      %1706 = vmatpush1.msra.mxu0 0.0
      %1707 = vmatprep.subr.mxu0 0.0
      %1708 = vmatpush1.msra.mxu0 0.0
      %1709 = vmatprep.subr.mxu0 0.0
      %1710 = vmatpush1.msra.mxu0 0.0
      %1711 = vmatprep.subr.mxu0 0.0
      %1712 = vmatpush1.msra.mxu0 0.0
      %1713 = vmatprep.mubr.f32.mxu0 0.0
      %1714 = vmatmul.mubr.f32.gmra.mrb[0].mxu0 %v1644
      %v1715 = vpop.f32.mrb[0].mxu0
      %v1716 = vadd.f32 %v1636, %v1715
      %v1717 = vpop.f32.mrb[0].mxu0
      %1718 = vmatprep.mubr.f32.mxu0 0.0
      %1719 = vmatmul.mubr.f32.gmra.mrb[0].mxu0 %v1647
      %v1720 = vpop.f32.mrb[0].mxu0
      %v1721 = vadd.f32 %v1641, %v1720
      %v1722 = vpop.f32.mrb[0].mxu0
      %1723 = vdwg.mxu0
      %v1724 = vmax.f32 %v1716, 0.0
      %v1725 = vmax.f32 %v1721, 0.0
      %v1726 = vld [vmem:[%s19] sm:$0x1]
      %v1727 = vld [vmem:[#allocation4] sm:$0x1]
      %1729 = vset.pattern.permute.xlu0 0
      %1730 = vperm.xlu0 %1729, %v1727
      %v1731 = vpop.permute.xlu0 %1730
      %v1733 = vlaneseq
      %v1734 = vshrl.u32 %v1733, 7
      %v1735 = vsub.s32 0, %v1734
      %v1736 = vrot.slane %v1731, %v1735
      %v1738 = vsel %vm1271, %v1726, 0
      %1740 = vmatprep.subr.mxu0 0.0
      %1741 = vmatpush1.msra.mxu0 %v1724
      %1742 = vmatprep.subr.mxu0 0.0
      %1743 = vmatpush1.msra.mxu0 %v1725
      %1744 = vmatprep.subr.mxu0 0.0
      %1745 = vmatpush1.msra.mxu0 0.0
      %1746 = vmatprep.subr.mxu0 0.0
      %1747 = vmatpush1.msra.mxu0 0.0
      %1748 = vmatprep.subr.mxu0 0.0
      %1749 = vmatpush1.msra.mxu0 0.0
      %1750 = vmatprep.subr.mxu0 0.0
      %1751 = vmatpush1.msra.mxu0 0.0
      %1752 = vmatprep.subr.mxu0 0.0
      %1753 = vmatpush1.msra.mxu0 0.0
      %1754 = vmatprep.subr.mxu0 0.0
      %1755 = vmatpush1.msra.mxu0 0.0
      %1756 = vmatprep.subr.mxu0 0.0
      %1757 = vmatpush1.msra.mxu0 0.0
      %1758 = vmatprep.subr.mxu0 0.0
      %1759 = vmatpush1.msra.mxu0 0.0
      %1760 = vmatprep.subr.mxu0 0.0
      %1761 = vmatpush1.msra.mxu0 0.0
      %1762 = vmatprep.subr.mxu0 0.0
      %1763 = vmatpush1.msra.mxu0 0.0
      %1764 = vmatprep.subr.mxu0 0.0
      %1765 = vmatpush1.msra.mxu0 0.0
      %1766 = vmatprep.subr.mxu0 0.0
      %1767 = vmatpush1.msra.mxu0 0.0
      %1768 = vmatprep.subr.mxu0 0.0
      %1769 = vmatpush1.msra.mxu0 0.0
      %1770 = vmatprep.subr.mxu0 0.0
      %1771 = vmatpush1.msra.mxu0 0.0
      %1772 = vmatprep.subr.mxu0 0.0
      %1773 = vmatpush1.msra.mxu0 0.0
      %1774 = vmatprep.subr.mxu0 0.0
      %1775 = vmatpush1.msra.mxu0 0.0
      %1776 = vmatprep.subr.mxu0 0.0
      %1777 = vmatpush1.msra.mxu0 0.0
      %1778 = vmatprep.subr.mxu0 0.0
      %1779 = vmatpush1.msra.mxu0 0.0
      %1780 = vmatprep.subr.mxu0 0.0
      %1781 = vmatpush1.msra.mxu0 0.0
      %1782 = vmatprep.subr.mxu0 0.0
      %1783 = vmatpush1.msra.mxu0 0.0
      %1784 = vmatprep.subr.mxu0 0.0
      %1785 = vmatpush1.msra.mxu0 0.0
      %1786 = vmatprep.subr.mxu0 0.0
      %1787 = vmatpush1.msra.mxu0 0.0
      %1788 = vmatprep.subr.mxu0 0.0
      %1789 = vmatpush1.msra.mxu0 0.0
      %1790 = vmatprep.subr.mxu0 0.0
      %1791 = vmatpush1.msra.mxu0 0.0
      %1792 = vmatprep.subr.mxu0 0.0
      %1793 = vmatpush1.msra.mxu0 0.0
      %1794 = vmatprep.subr.mxu0 0.0
      %1795 = vmatpush1.msra.mxu0 0.0
      %1796 = vmatprep.subr.mxu0 0.0
      %1797 = vmatpush1.msra.mxu0 0.0
      %1798 = vmatprep.subr.mxu0 0.0
      %1799 = vmatpush1.msra.mxu0 0.0
      %1800 = vmatprep.subr.mxu0 0.0
      %1801 = vmatpush1.msra.mxu0 0.0
      %1802 = vmatprep.subr.mxu0 0.0
      %1803 = vmatpush1.msra.mxu0 0.0
      %1804 = vmatprep.mubr.f32.mxu0 0.0
      %1805 = vmatmul.mubr.f32.gmra.mrb[0].mxu0 %v1738
      %v1806 = vpop.f32.mrb[0].mxu0
      %v1807 = vadd.f32 %v1736, %v1806
      %v1808 = vpop.f32.mrb[0].mxu0
      %1809 = vdwg.mxu0
      %v1810 = vxor.u32 %v1807, 2147483648
      %v1811 = vmul.f32 %v1810, 1.442695
      %v1812 = vpow.pop %v1811
      %v1813 = vadd.f32 %v1812, 1.0
      %v1814 = vrcp.pop %v1813
      %v1815 = vmul.f32 1.0, %v1814
      %vm1816 = vcmask 57344
      %1817 = vst.msk [vmem:[%s701] sm:$0x1] %vm1816, %v1815
      %p1818 = scmp.lt.s32.totalorder %s36, 9
      %s1819 = scalar_select %p1818, %s36, 9
      %s1820 = scalar_lea.vmem %s21, %s1819
      // Predicated region
      $region109: #{air_mprnn_forward.1} parent=103 // pred_check
        %p1821 = pneg %p515
      $region110: #{air_mprnn_forward.1} parent=103 // pred_check_branch
        %1823 = sbr.rel (%p1821) target = $region112
      $region111: #{air_mprnn_forward.1} parent=103 // pred_region
        _
      $region112: #{air_mprnn_forward.1} parent=103 // pred_fallthru
        _
    $region104: #{air_mprnn_forward.1} parent=5 // pred_fallthru
      _
    %p1824 = scmp.le.s32.totalorder 2, %s31
    // Predicated region
    $region113: #{air_mprnn_forward.1} parent=5 // pred_check
      %p1825 = pneg %p1824
    $region114: #{air_mprnn_forward.1} parent=5 // pred_check_branch
      %1827 = sbr.rel (%p1825) target = $region116
    $region115: #{air_mprnn_forward.1} parent=5 // pred_region
      %s1828 = ssub.s32 %s31, 2
      // Predicated region
      $region117: #{air_mprnn_forward.1} parent=115 // pred_check
        %p1829 = pneg %p521
      $region118: #{air_mprnn_forward.1} parent=115 // pred_check_branch
        %1831 = sbr.rel (%p1829) target = $region120
      $region119: #{air_mprnn_forward.1} parent=115 // pred_region
        %p1832 = scmp.lt.s32.totalorder %s37, 9
        %s1833 = scalar_select %p1832, %s37, 9
        %s1834 = scalar_lea.vmem %s21, %s1833
      $region120: #{air_mprnn_forward.1} parent=115 // pred_fallthru
        _
    $region116: #{air_mprnn_forward.1} parent=5 // pred_fallthru
      _
  $region6: #{air_mprnn_forward.1} parent=0 // loop_footer
    %s35 = sadd.s32 1, %s31
  $region7: #{air_mprnn_forward.1} parent=0 // loop_footer_branch
    %30 = sbr.rel target = $region3
  $region8: #{air_mprnn_forward.1} parent=0 // loop_exit
    _

</llo_original>
